<compile_context>
chip_gen: v5e
topology: v5e:2x2
jax: 0.10.0
libtpu: 0.0.40
codegen_flags: <defaults>
</compile_context>

<pallas_src>
import functools
from math import exp

import jax
import jax.numpy as jnp
from jax import lax
from jax.experimental import pallas as pl
from jax.experimental.pallas import tpu as pltpu


# ----------------------------------------------------------------------------
# Window construction (matches torch gaussian / create_window)
# ----------------------------------------------------------------------------
def gaussian_taps(window_size: int, sigma: float = 1.5):
    g = [exp(-((x - window_size // 2) ** 2) / float(2 * sigma ** 2))
         for x in range(window_size)]
    s = sum(g)
    return tuple(float(v / s) for v in g)


def band_matrix(taps, n_in: int, n_out: int) -> jnp.ndarray:
    """Banded tap matrix M (n_in, n_out) with M[c + j, c] = taps[j]."""
    ws = len(taps)
    g = jnp.asarray(taps, dtype=jnp.float32)
    rows = jnp.arange(n_in)[:, None]
    cols = jnp.arange(n_out)[None, :]
    j = rows - cols
    valid = (j >= 0) & (j < ws)
    vals = g[jnp.clip(j, 0, ws - 1)]
    return jnp.where(valid, vals, jnp.float32(0.0)).astype(jnp.float32)


# ----------------------------------------------------------------------------
# Pallas kernel
# ----------------------------------------------------------------------------
def _ssim_kernel(img1_ref, img2_ref, aw_ref, out_ref, rp_ref, acc_ref,
                 *, planes, hout, taps):
    # img refs : VMEM block (planes, H, W), original dtype
    # aw_ref   : VMEM (W, Wout) f32 row-pass tap matrix
    # out_ref  : SMEM (1, 1) f32 per-core partial sum of the ssim map
    # rp_ref   : VMEM (5*planes, H, Wout) f32 row-pass scratch
    # acc_ref  : VMEM (planes, Hout, Wout) f32 element-wise ssim accumulator
    i = pl.program_id(1)                      # reduction axis (plane blocks)

    @pl.when(i == 0)
    def _init():
        acc_ref[...] = jnp.zeros_like(acc_ref)

    a = img1_ref[...].astype(jnp.float32)     # (planes, H, W)
    b = img2_ref[...].astype(jnp.float32)

    # Stack the 5 fields of every plane and run the separable row pass as ONE
    # MXU matmul.  TODO(synk): band-block this contraction (and/or use bf16
    # operands on v6e/v7x) for very large W, where the dense (W, Wout) tap
    # matrix wastes ~W/11x MXU FLOPs; kept dense f32 here for accuracy.
    fields = jnp.concatenate([a, b, a * a, b * b, a * b], axis=0)
    p5, h, w = fields.shape
    wout = aw_ref.shape[1]
    rp = jnp.dot(fields.reshape(p5 * h, w), aw_ref[...],
                 preferred_element_type=jnp.float32)          # (5P*H, Wout)
    rp_ref[...] = rp.reshape(p5, h, wout)

    # Column pass: ws shifted multiply-adds on the VPU (taps are compile-time
    # constants), instead of a dense (Hout, H) matmul.
    cp = taps[0] * rp_ref[:, pl.ds(0, hout), :]
    for j in range(1, len(taps)):
        cp = cp + taps[j] * rp_ref[:, pl.ds(j, hout), :]
    # cp: (5*planes, Hout, Wout), field-major windowed sums.

    mu1 = cp[0 * planes:1 * planes]
    mu2 = cp[1 * planes:2 * planes]
    e11 = cp[2 * planes:3 * planes]
    e22 = cp[3 * planes:4 * planes]
    e12 = cp[4 * planes:5 * planes]

    c1 = jnp.float32(0.01 ** 2)
    c2 = jnp.float32(0.03 ** 2)

    mu1_sq = mu1 * mu1
    mu2_sq = mu2 * mu2
    mu1_mu2 = mu1 * mu2
    sigma1_sq = e11 - mu1_sq
    sigma2_sq = e22 - mu2_sq
    sigma12 = e12 - mu1_mu2

    v1 = 2.0 * sigma12 + c2
    v2 = sigma1_sq + sigma2_sq + c2
    num = (2.0 * mu1_mu2 + c1) * v1
    den = (mu1_sq + mu2_sq + c1) * v2

    # EUP approx reciprocal + one Newton step: ~f32 accuracy, no VPU divide.
    inv = pl.reciprocal(den, approx=True)
    inv = inv * (2.0 - den * inv)
    acc_ref[...] += num * inv

    @pl.when(i == pl.num_programs(1) - 1)
    def _finalize():
        out_ref[0, 0] = jnp.sum(acc_ref[...])


# ----------------------------------------------------------------------------
# Wrapper (equivalent of SSIM.forward with size_average=True, full=False)
# ----------------------------------------------------------------------------
def _vmem_limits():
    try:
        cap = int(pltpu.get_tpu_info().vmem_capacity_bytes)
    except Exception:                       # conservative fallback (v7x-sized)
        cap = 64 * 1024 * 1024
    block_budget = max(8 * 1024 * 1024, int(0.40 * cap))
    vmem_limit = max(32 * 1024 * 1024, min(int(0.75 * cap), 100 * 1024 * 1024))
    return block_budget, vmem_limit


def _choose_planes(nc, h, w, wout, itemsize, budget_bytes):
    # Per-plane VMEM: 2 inputs x 2 pipeline buffers (native dtype) + f32 field
    # stack + row-pass scratch/value + ssim-map temporaries.
    per_plane = h * w * (4 * itemsize + 20) + h * wout * 80
    return int(max(1, min(nc, budget_bytes // max(per_plane, 1))))


def ssim_pallas(img1: jnp.ndarray, img2: jnp.ndarray,
                window_size: int = 11) -> jnp.ndarray:
    assert img1.shape == img2.shape and img1.ndim == 4
    N, C, H, W = img1.shape
    ws = window_size
    assert H >= ws and W >= ws, "image smaller than the SSIM window"
    Hout = H - ws + 1
    Wout = W - ws + 1
    NC = N * C

    taps = gaussian_taps(ws, 1.5)
    aw = band_matrix(taps, W, Wout)                 # (W, Wout) row-pass taps

    block_budget, vmem_limit = _vmem_limits()
    planes = _choose_planes(NC, H, W, Wout,
                            jnp.dtype(img1.dtype).itemsize, block_budget)

    blocks = pl.cdiv(NC, planes)
    num_par = 2 if blocks >= 2 else 1               # feed both v7x TensorCores
    steps = pl.cdiv(blocks, num_par)
    nc_pad = num_par * steps * planes
    pad = nc_pad - NC

    # Flatten batch/channel into independent planes (metadata-only reshape;
    # data travels HBM->VMEM in its original dtype).
    x1 = img1.reshape(NC, H, W)
    x2 = img2.reshape(NC, H, W)
    if pad:
        # Zero planes yield exactly 1.0 per output pixel; corrected below.
        x1 = jnp.pad(x1, ((0, pad), (0, 0), (0, 0)))
        x2 = jnp.pad(x2, ((0, pad), (0, 0), (0, 0)))

    kernel = functools.partial(_ssim_kernel, planes=planes, hout=Hout,
                               taps=taps)
    img_spec = pl.BlockSpec((planes, H, W), lambda c, i: (c * steps + i, 0, 0))

    parts = pl.pallas_call(
        kernel,
        out_shape=jax.ShapeDtypeStruct((num_par, 1), jnp.float32),
        grid_spec=pltpu.PrefetchScalarGridSpec(
            num_scalar_prefetch=0,
            grid=(num_par, steps),
            in_specs=[
                img_spec,                                       # img1 block
                img_spec,                                       # img2 block
                pl.BlockSpec((W, Wout), lambda c, i: (0, 0)),   # row-pass taps
            ],
            out_specs=pl.BlockSpec((1, 1), lambda c, i: (c, 0),
                                   memory_space=pltpu.MemorySpace.SMEM),
            scratch_shapes=[
                pltpu.VMEM((5 * planes, H, Wout), jnp.float32),  # row-pass
                pltpu.VMEM((planes, Hout, Wout), jnp.float32),   # ssim accum
            ],
        ),
        compiler_params=pltpu.CompilerParams(
            dimension_semantics=("parallel", "arbitrary"),
            vmem_limit_bytes=vmem_limit,
        ),
    )(x1, x2, aw)

    total = jnp.sum(parts)
    if pad:
        total = total - jnp.float32(pad * Hout * Wout)
    return total / jnp.float32(NC * Hout * Wout)


# ----------------------------------------------------------------------------
# Pure-JAX reference (for correctness check only)
# ----------------------------------------------------------------------------
def ssim_ref(img1, img2, window_size=11):
    N, C, H, W = img1.shape
    g = jnp.asarray(gaussian_taps(window_size, 1.5), dtype=jnp.float32)
    win = jnp.outer(g, g)
    kernel = jnp.broadcast_to(win[None, None], (C, 1, window_size, window_size))

    def dwconv(x):
        return lax.conv_general_dilated(
            x.astype(jnp.float32), kernel, window_strides=(1, 1),
            padding="VALID", dimension_numbers=("NCHW", "OIHW", "NCHW"),
            feature_group_count=C)

    i1 = img1.astype(jnp.float32)
    i2 = img2.astype(jnp.float32)
    mu1, mu2 = dwconv(i1), dwconv(i2)
    mu1_sq, mu2_sq, mu1_mu2 = mu1 * mu1, mu2 * mu2, mu1 * mu2
    sigma1_sq = dwconv(i1 * i1) - mu1_sq
    sigma2_sq = dwconv(i2 * i2) - mu2_sq
    sigma12 = dwconv(i1 * i2) - mu1_mu2
    c1, c2 = 0.01 ** 2, 0.03 ** 2
    v1 = 2.0 * sigma12 + c2
    v2 = sigma1_sq + sigma2_sq + c2
    ssim_map = (2 * mu1_mu2 + c1) * v1 / ((mu1_sq + mu2_sq + c1) * v2)
    return jnp.mean(ssim_map)


if __name__ == "__main__":
    key = jax.random.PRNGKey(0)
    k1, k2 = jax.random.split(key)
    N, C, H, W = 2, 4, 16, 16
    img1 = jax.random.uniform(k1, (N, C, H, W), dtype=jnp.float32)
    img2 = jax.random.uniform(k2, (N, C, H, W), dtype=jnp.float32)

    out = jax.block_until_ready(ssim_pallas(img1, img2, window_size=11))
    ref = jax.block_until_ready(ssim_ref(img1, img2, window_size=11))

    assert jnp.isfinite(out), "non-finite SSIM output"
    assert abs(float(out) - float(ref)) < 1e-4, (float(out), float(ref))
    print("KERNEL_OK")
</pallas_src>

<mosaic_0001>
module attributes {stable_mosaic.version = 11 : i64} {
  func.func @_ssim_kernel(%arg0: i32, %arg1: i32, %arg2: memref<8x16x16xf32, #tpu.memory_space<vmem>>, %arg3: memref<8x16x16xf32, #tpu.memory_space<vmem>>, %arg4: memref<16x6xf32, #tpu.memory_space<vmem>>, %arg5: memref<1x1xf32, #tpu.memory_space<smem>>, %arg6: memref<40x16x6xf32, #tpu.memory_space<vmem>>, %arg7: memref<8x6x6xf32, #tpu.memory_space<vmem>>) attributes {dimension_semantics = [#tpu.dimension_semantics<parallel>, #tpu.dimension_semantics<arbitrary>], iteration_bounds = array<i64: 1, 1>, scalar_prefetch = 0 : i64, scratch_operands = 2 : i64, tpu.core_type = #tpu.core_type<tc>, window_params = [{transform_indices = @transform_0, window_bounds = array<i64: 8, 16, 16>}, {transform_indices = @transform_1, window_bounds = array<i64: 8, 16, 16>}, {pipeline_mode = #tpu.pipeline_mode<synchronous>, transform_indices = @transform_2, window_bounds = array<i64: 16, 6>}, {transform_indices = @transform_3, window_bounds = array<i64: 1, 1>}]} {
    %c0_i32 = arith.constant 0 : i32
    %0 = arith.cmpi eq, %arg1, %c0_i32 : i32
    %1 = arith.extui %0 : i1 to i32
    %c0_i32_0 = arith.constant 0 : i32
    %2 = arith.cmpi ne, %1, %c0_i32_0 : i32
    scf.if %2 {
      %cst_60 = arith.constant 0.000000e+00 : f32
      %96 = vector.broadcast %cst_60 : f32 to vector<8x6x6xf32>
      %c0_61 = arith.constant 0 : index
      %c0_62 = arith.constant 0 : index
      %c0_63 = arith.constant 0 : index
      %97 = vector.load %arg7[%c0_61, %c0_62, %c0_63] : memref<8x6x6xf32, #tpu.memory_space<vmem>>, vector<8x6x6xf32>
      tpu.vector_store %arg7[%c0_61, %c0_62, %c0_63], %96 {strides = array<i32>} : memref<8x6x6xf32, #tpu.memory_space<vmem>>, vector<8x6x6xf32>,
    } else {
    }
    %c0 = arith.constant 0 : index
    %c0_1 = arith.constant 0 : index
    %c0_2 = arith.constant 0 : index
    %3 = vector.load %arg2[%c0, %c0_1, %c0_2] : memref<8x16x16xf32, #tpu.memory_space<vmem>>, vector<8x16x16xf32>
    %c0_3 = arith.constant 0 : index
    %c0_4 = arith.constant 0 : index
    %c0_5 = arith.constant 0 : index
    %4 = vector.load %arg3[%c0_3, %c0_4, %c0_5] : memref<8x16x16xf32, #tpu.memory_space<vmem>>, vector<8x16x16xf32>
    %5 = arith.mulf %3, %3 : vector<8x16x16xf32>
    %6 = arith.mulf %4, %4 : vector<8x16x16xf32>
    %7 = arith.mulf %3, %4 : vector<8x16x16xf32>
    %8 = tpu.concatenate %3, %4, %5, %6, %7 in 0 : vector<8x16x16xf32>, vector<8x16x16xf32>, vector<8x16x16xf32>, vector<8x16x16xf32>, vector<8x16x16xf32> -> vector<40x16x16xf32>
    %9 = vector.shape_cast %8 : vector<40x16x16xf32> to vector<640x16xf32>
    %c0_6 = arith.constant 0 : index
    %c0_7 = arith.constant 0 : index
    %10 = vector.load %arg4[%c0_6, %c0_7] : memref<16x6xf32, #tpu.memory_space<vmem>>, vector<16x6xf32>
    %cst = arith.constant dense<0.000000e+00> : vector<640x6xf32>
    %11 = tpu.matmul %9, %10, %cst {dimension_numbers = #tpu.dot_dimension_numbers<[1], [0], [0], [1], [0, 0, 1, 1], [], []>} : vector<640x16xf32>, vector<16x6xf32>, vector<640x6xf32> -> vector<640x6xf32>
    %12 = vector.shape_cast %11 : vector<640x6xf32> to vector<40x16x6xf32>
    %c0_8 = arith.constant 0 : index
    %c0_9 = arith.constant 0 : index
    %c0_10 = arith.constant 0 : index
    %13 = vector.load %arg6[%c0_8, %c0_9, %c0_10] : memref<40x16x6xf32, #tpu.memory_space<vmem>>, vector<40x16x6xf32>
    tpu.vector_store %arg6[%c0_8, %c0_9, %c0_10], %12 {strides = array<i32>} : memref<40x16x6xf32, #tpu.memory_space<vmem>>, vector<40x16x6xf32>,
    %c0_11 = arith.constant 0 : index
    %c0_12 = arith.constant 0 : index
    %c0_13 = arith.constant 0 : index
    %14 = vector.load %arg6[%c0_11, %c0_12, %c0_13] : memref<40x16x6xf32, #tpu.memory_space<vmem>>, vector<40x6x6xf32>
    %cst_14 = arith.constant 0.00102838012 : f32
    %15 = vector.broadcast %cst_14 : f32 to vector<40x6x6xf32>
    %16 = arith.mulf %15, %14 : vector<40x6x6xf32>
    %c0_15 = arith.constant 0 : index
    %c1 = arith.constant 1 : index
    %c0_16 = arith.constant 0 : index
    %17 = vector.load %arg6[%c0_15, %c1, %c0_16] : memref<40x16x6xf32, #tpu.memory_space<vmem>>, vector<40x6x6xf32>
    %cst_17 = arith.constant 0.00759875821 : f32
    %18 = vector.broadcast %cst_17 : f32 to vector<40x6x6xf32>
    %19 = arith.mulf %18, %17 : vector<40x6x6xf32>
    %20 = arith.addf %16, %19 : vector<40x6x6xf32>
    %c0_18 = arith.constant 0 : index
    %c2 = arith.constant 2 : index
    %c0_19 = arith.constant 0 : index
    %21 = vector.load %arg6[%c0_18, %c2, %c0_19] : memref<40x16x6xf32, #tpu.memory_space<vmem>>, vector<40x6x6xf32>
    %cst_20 = arith.constant 0.0360007733 : f32
    %22 = vector.broadcast %cst_20 : f32 to vector<40x6x6xf32>
    %23 = arith.mulf %22, %21 : vector<40x6x6xf32>
    %24 = arith.addf %20, %23 : vector<40x6x6xf32>
    %c0_21 = arith.constant 0 : index
    %c3 = arith.constant 3 : index
    %c0_22 = arith.constant 0 : index
    %25 = vector.load %arg6[%c0_21, %c3, %c0_22] : memref<40x16x6xf32, #tpu.memory_space<vmem>>, vector<40x6x6xf32>
    %cst_23 = arith.constant 0.109360687 : f32
    %26 = vector.broadcast %cst_23 : f32 to vector<40x6x6xf32>
    %27 = arith.mulf %26, %25 : vector<40x6x6xf32>
    %28 = arith.addf %24, %27 : vector<40x6x6xf32>
    %c0_24 = arith.constant 0 : index
    %c4 = arith.constant 4 : index
    %c0_25 = arith.constant 0 : index
    %29 = vector.load %arg6[%c0_24, %c4, %c0_25] : memref<40x16x6xf32, #tpu.memory_space<vmem>>, vector<40x6x6xf32>
    %cst_26 = arith.constant 0.213005543 : f32
    %30 = vector.broadcast %cst_26 : f32 to vector<40x6x6xf32>
    %31 = arith.mulf %30, %29 : vector<40x6x6xf32>
    %32 = arith.addf %28, %31 : vector<40x6x6xf32>
    %c0_27 = arith.constant 0 : index
    %c5 = arith.constant 5 : index
    %c0_28 = arith.constant 0 : index
    %33 = vector.load %arg6[%c0_27, %c5, %c0_28] : memref<40x16x6xf32, #tpu.memory_space<vmem>>, vector<40x6x6xf32>
    %cst_29 = arith.constant 0.266011715 : f32
    %34 = vector.broadcast %cst_29 : f32 to vector<40x6x6xf32>
    %35 = arith.mulf %34, %33 : vector<40x6x6xf32>
    %36 = arith.addf %32, %35 : vector<40x6x6xf32>
    %c0_30 = arith.constant 0 : index
    %c6 = arith.constant 6 : index
    %c0_31 = arith.constant 0 : index
    %37 = vector.load %arg6[%c0_30, %c6, %c0_31] : memref<40x16x6xf32, #tpu.memory_space<vmem>>, vector<40x6x6xf32>
    %cst_32 = arith.constant 0.213005543 : f32
    %38 = vector.broadcast %cst_32 : f32 to vector<40x6x6xf32>
    %39 = arith.mulf %38, %37 : vector<40x6x6xf32>
    %40 = arith.addf %36, %39 : vector<40x6x6xf32>
    %c0_33 = arith.constant 0 : index
    %c7 = arith.constant 7 : index
    %c0_34 = arith.constant 0 : index
    %41 = vector.load %arg6[%c0_33, %c7, %c0_34] : memref<40x16x6xf32, #tpu.memory_space<vmem>>, vector<40x6x6xf32>
    %cst_35 = arith.constant 0.109360687 : f32
    %42 = vector.broadcast %cst_35 : f32 to vector<40x6x6xf32>
    %43 = arith.mulf %42, %41 : vector<40x6x6xf32>
    %44 = arith.addf %40, %43 : vector<40x6x6xf32>
    %c0_36 = arith.constant 0 : index
    %c8 = arith.constant 8 : index
    %c0_37 = arith.constant 0 : index
    %45 = vector.load %arg6[%c0_36, %c8, %c0_37] : memref<40x16x6xf32, #tpu.memory_space<vmem>>, vector<40x6x6xf32>
    %cst_38 = arith.constant 0.0360007733 : f32
    %46 = vector.broadcast %cst_38 : f32 to vector<40x6x6xf32>
    %47 = arith.mulf %46, %45 : vector<40x6x6xf32>
    %48 = arith.addf %44, %47 : vector<40x6x6xf32>
    %c0_39 = arith.constant 0 : index
    %c9 = arith.constant 9 : index
    %c0_40 = arith.constant 0 : index
    %49 = vector.load %arg6[%c0_39, %c9, %c0_40] : memref<40x16x6xf32, #tpu.memory_space<vmem>>, vector<40x6x6xf32>
    %cst_41 = arith.constant 0.00759875821 : f32
    %50 = vector.broadcast %cst_41 : f32 to vector<40x6x6xf32>
    %51 = arith.mulf %50, %49 : vector<40x6x6xf32>
    %52 = arith.addf %48, %51 : vector<40x6x6xf32>
    %c0_42 = arith.constant 0 : index
    %c10 = arith.constant 10 : index
    %c0_43 = arith.constant 0 : index
    %53 = vector.load %arg6[%c0_42, %c10, %c0_43] : memref<40x16x6xf32, #tpu.memory_space<vmem>>, vector<40x6x6xf32>
    %cst_44 = arith.constant 0.00102838012 : f32
    %54 = vector.broadcast %cst_44 : f32 to vector<40x6x6xf32>
    %55 = arith.mulf %54, %53 : vector<40x6x6xf32>
    %56 = arith.addf %52, %55 : vector<40x6x6xf32>
    %57 = vector.extract_strided_slice %56 {offsets = [0, 0, 0], sizes = [8, 6, 6], strides = [1, 1, 1]} : vector<40x6x6xf32> to vector<8x6x6xf32>
    %58 = vector.extract_strided_slice %56 {offsets = [8, 0, 0], sizes = [8, 6, 6], strides = [1, 1, 1]} : vector<40x6x6xf32> to vector<8x6x6xf32>
    %59 = vector.extract_strided_slice %56 {offsets = [16, 0, 0], sizes = [8, 6, 6], strides = [1, 1, 1]} : vector<40x6x6xf32> to vector<8x6x6xf32>
    %60 = vector.extract_strided_slice %56 {offsets = [24, 0, 0], sizes = [8, 6, 6], strides = [1, 1, 1]} : vector<40x6x6xf32> to vector<8x6x6xf32>
    %61 = vector.extract_strided_slice %56 {offsets = [32, 0, 0], sizes = [8, 6, 6], strides = [1, 1, 1]} : vector<40x6x6xf32> to vector<8x6x6xf32>
    %62 = arith.mulf %57, %57 : vector<8x6x6xf32>
    %63 = arith.mulf %58, %58 : vector<8x6x6xf32>
    %64 = arith.mulf %57, %58 : vector<8x6x6xf32>
    %65 = arith.subf %59, %62 : vector<8x6x6xf32>
    %66 = arith.subf %60, %63 : vector<8x6x6xf32>
    %67 = arith.subf %61, %64 : vector<8x6x6xf32>
    %cst_45 = arith.constant 2.000000e+00 : f32
    %68 = vector.broadcast %cst_45 : f32 to vector<8x6x6xf32>
    %69 = arith.mulf %68, %67 : vector<8x6x6xf32>
    %cst_46 = arith.constant 8.99999984E-4 : f32
    %70 = vector.broadcast %cst_46 : f32 to vector<8x6x6xf32>
    %71 = arith.addf %69, %70 : vector<8x6x6xf32>
    %72 = arith.addf %65, %66 : vector<8x6x6xf32>
    %cst_47 = arith.constant 8.99999984E-4 : f32
    %73 = vector.broadcast %cst_47 : f32 to vector<8x6x6xf32>
    %74 = arith.addf %72, %73 : vector<8x6x6xf32>
    %cst_48 = arith.constant 2.000000e+00 : f32
    %75 = vector.broadcast %cst_48 : f32 to vector<8x6x6xf32>
    %76 = arith.mulf %75, %64 : vector<8x6x6xf32>
    %cst_49 = arith.constant 9.99999974E-5 : f32
    %77 = vector.broadcast %cst_49 : f32 to vector<8x6x6xf32>
    %78 = arith.addf %76, %77 : vector<8x6x6xf32>
    %79 = arith.mulf %78, %71 : vector<8x6x6xf32>
    %80 = arith.addf %62, %63 : vector<8x6x6xf32>
    %cst_50 = arith.constant 9.99999974E-5 : f32
    %81 = vector.broadcast %cst_50 : f32 to vector<8x6x6xf32>
    %82 = arith.addf %80, %81 : vector<8x6x6xf32>
    %83 = arith.mulf %82, %74 : vector<8x6x6xf32>
    %84 = tpu.reciprocal %83 {approx = true} : vector<8x6x6xf32> -> vector<8x6x6xf32>
    %85 = arith.mulf %83, %84 : vector<8x6x6xf32>
    %cst_51 = arith.constant 2.000000e+00 : f32
    %86 = vector.broadcast %cst_51 : f32 to vector<8x6x6xf32>
    %87 = arith.subf %86, %85 : vector<8x6x6xf32>
    %88 = arith.mulf %84, %87 : vector<8x6x6xf32>
    %c0_52 = arith.constant 0 : index
    %c0_53 = arith.constant 0 : index
    %c0_54 = arith.constant 0 : index
    %89 = vector.load %arg7[%c0_52, %c0_53, %c0_54] : memref<8x6x6xf32, #tpu.memory_space<vmem>>, vector<8x6x6xf32>
    %90 = arith.mulf %79, %88 : vector<8x6x6xf32>
    %91 = arith.addf %89, %90 : vector<8x6x6xf32>
    %c0_55 = arith.constant 0 : index
    %c0_56 = arith.constant 0 : index
    %c0_57 = arith.constant 0 : index
    %92 = vector.load %arg7[%c0_55, %c0_56, %c0_57] : memref<8x6x6xf32, #tpu.memory_space<vmem>>, vector<8x6x6xf32>
    tpu.vector_store %arg7[%c0_55, %c0_56, %c0_57], %91 {strides = array<i32>} : memref<8x6x6xf32, #tpu.memory_space<vmem>>, vector<8x6x6xf32>,
    %c0_i32_58 = arith.constant 0 : i32
    %93 = arith.cmpi eq, %arg1, %c0_i32_58 : i32
    %94 = arith.extui %93 : i1 to i32
    %c0_i32_59 = arith.constant 0 : i32
    %95 = arith.cmpi ne, %94, %c0_i32_59 : i32
    scf.if %95 {
      %c0_60 = arith.constant 0 : index
      %c0_61 = arith.constant 0 : index
      %c0_62 = arith.constant 0 : index
      %96 = vector.load %arg7[%c0_60, %c0_61, %c0_62] : memref<8x6x6xf32, #tpu.memory_space<vmem>>, vector<8x6x6xf32>
      %97 = vector.shape_cast %96 : vector<8x6x6xf32> to vector<1x8x6x6xf32>
      %cst_63 = arith.constant dense<0.000000e+00> : vector<1xf32>
      %98 = vector.multi_reduction <add>, %97, %cst_63 [1, 2, 3] : vector<1x8x6x6xf32> to vector<1xf32>
      %99 = vector.shape_cast %98 : vector<1xf32> to vector<1x1x1x1xf32>
      %100 = vector.extract %99[0, 0, 0, 0] : f32 from vector<1x1x1x1xf32>
      %c0_64 = arith.constant 0 : index
      %c0_65 = arith.constant 0 : index
      %101 = memref.load %arg5[%c0_64, %c0_65] : memref<1x1xf32, #tpu.memory_space<smem>>
      memref.store %100, %arg5[%c0_64, %c0_65] : memref<1x1xf32, #tpu.memory_space<smem>>
    } else {
    }
    return
  }
  func.func @transform_0(%arg0: i32, %arg1: i32) -> (i32, i32, i32) {
    %c1_i32 = arith.constant 1 : i32
    %0 = arith.muli %arg0, %c1_i32 : i32
    %1 = arith.addi %0, %arg1 : i32
    %c0_i32 = arith.constant 0 : i32
    %c0_i32_0 = arith.constant 0 : i32
    %c0_i32_1 = arith.constant 0 : i32
    return %1, %c0_i32, %c0_i32_0 : i32, i32, i32
  }
  func.func @transform_1(%arg0: i32, %arg1: i32) -> (i32, i32, i32) {
    %c1_i32 = arith.constant 1 : i32
    %0 = arith.muli %arg0, %c1_i32 : i32
    %1 = arith.addi %0, %arg1 : i32
    %c0_i32 = arith.constant 0 : i32
    %c0_i32_0 = arith.constant 0 : i32
    %c0_i32_1 = arith.constant 0 : i32
    return %1, %c0_i32, %c0_i32_0 : i32, i32, i32
  }
  func.func @transform_2(%arg0: i32, %arg1: i32) -> (i32, i32) {
    %c0_i32 = arith.constant 0 : i32
    %c0_i32_0 = arith.constant 0 : i32
    %c0_i32_1 = arith.constant 0 : i32
    return %c0_i32, %c0_i32_0 : i32, i32
  }
  func.func @transform_3(%arg0: i32, %arg1: i32) -> (i32, i32) {
    %c0_i32 = arith.constant 0 : i32
    %c0_i32_0 = arith.constant 0 : i32
    return %arg0, %c0_i32 : i32, i32
  }
}

</mosaic_0001>

<llo_original>
// kernel: tpu_custom_call.1
$region0: #{tpu_custom_call.1}
  #allocation0 [shape = 'u32[]', space=smem, size = 0x4, offset = 0x4, fixed_abs, tag = 'smem constant byte address 0x4 - core index']
  #allocation1 [shape = 'u32[72,128]{1,0:T(1,128)}', space=vmem, size = 0x9000, scoped, tag = 'internal scratch']
  #allocation2 [shape = 'f32[40,16,6]{2,1,0:T(8,128)}', space=vmem, size = 0x50000, scoped, tag = 'scratch operand']
  #allocation3 [shape = 'f32[8,6,6]{2,1,0:T(8,128)}', space=vmem, size = 0x8000, scoped, tag = 'scratch operand']
  %s0 = inlined_call_operand.hbm [shape: f32[8,16,16], index: 0, kind: input, shape index: {}]
  %s1 = inlined_call_operand.hbm [shape: f32[8,16,16], index: 1, kind: input, shape index: {}]
  %s2 = inlined_call_operand.vmem [shape: f32[16,6], index: 2, kind: input, shape index: {}]
  %s3 = inlined_call_operand.hbm [shape: f32[1,1], index: 3, kind: output, shape index: {}]
  %s4 = sld [smem:[#allocation0]]
  $region38: #{tpu_custom_call.1} parent=0
    _
  %s6 = ssub.s32 1, %s4
  %s7 = scalar_select 0, %s6, %s4
  $region1: #{tpu_custom_call.1} parent=0
    #allocation4 [shape = 'u8[65536]{0}', space=vmem, size = 0x10000, scoped, tag = 'input window, operand 0, single buffered']
    #allocation5 [shape = 's32[1]{0}', space=sflag, size = 0x4, scoped, tag = 'scoped memory for tpu_custom_call.1']
    #allocation6 [shape = 's32[1]{0}', space=sflag, size = 0x4, scoped, tag = 'scoped memory for tpu_custom_call.1']
    #allocation7 [shape = 'u8[65536]{0}', space=vmem, size = 0x10000, scoped, tag = 'input window, operand 1, single buffered']
    #allocation8 [shape = 's32[1]{0}', space=sflag, size = 0x4, scoped, tag = 'scoped memory for tpu_custom_call.1']
    #allocation9 [shape = 'u8[512]{0}', space=smem, size = 0x200, scoped, tag = 'output window, operand 0, single buffered']
    %8 = vsyncpa [#allocation5], 0
    %9 = vsyncpa [#allocation8], 0
    %10 = vsyncpa [#allocation6], 0
    // Predicated region
    $region2: #{tpu_custom_call.1} parent=1 // pred_check
      _
    $region3: #{tpu_custom_call.1} parent=1 // pred_check_branch
      %12 = sbr.rel (0) target = $region5
    $region4: #{tpu_custom_call.1} parent=1 // pred_region
      %s13 = sadd.s32 0, 0
      %s14 = smul.u32 8, %s13
      %16 = vsyncadd [#allocation5], 0
      %s17 = smul.addr %s14, 2
      %s18 = smul.addr %s17, 8
      %s19 = scalar_lea.hbm %s0, %s18
      %s20 = sshll.u32 %s19, 4
      %s21 = int_to_ptr.hbm [resolvable:$true] %s20
      %s22 = sshll.u32 [#allocation4], 4
      %s23 = int_to_ptr.vmem [resolvable:$true] %s22
      %28 = dma.hbm_to_vmem [thread:$0]  %s21, 2048, %s23, [#allocation5], 128, 128, 8
    $region5: #{tpu_custom_call.1} parent=1 // pred_fallthru
      _
    // Predicated region
    $region6: #{tpu_custom_call.1} parent=1 // pred_check
      _
    $region7: #{tpu_custom_call.1} parent=1 // pred_check_branch
      %30 = sbr.rel (0) target = $region9
    $region8: #{tpu_custom_call.1} parent=1 // pred_region
      %s31 = sadd.s32 0, 0
      %s32 = smul.u32 8, %s31
      %34 = vsyncadd [#allocation8], 0
      %s35 = smul.addr %s32, 2
      %s36 = smul.addr %s35, 8
      %s37 = scalar_lea.hbm %s1, %s36
      %s38 = sshll.u32 %s37, 4
      %s39 = int_to_ptr.hbm [resolvable:$true] %s38
      %s40 = sshll.u32 [#allocation7], 4
      %s41 = int_to_ptr.vmem [resolvable:$true] %s40
      %46 = dma.hbm_to_vmem [thread:$0]  %s39, 2048, %s41, [#allocation8], 128, 128, 8
    $region9: #{tpu_custom_call.1} parent=1 // pred_fallthru
      _
    // Predicated region
    $region10: #{tpu_custom_call.1} parent=1 // pred_check
      _
    $region11: #{tpu_custom_call.1} parent=1 // pred_check_branch
      %48 = sbr.rel (0) target = $region13
    $region12: #{tpu_custom_call.1} parent=1 // pred_region
      _
    $region13: #{tpu_custom_call.1} parent=1 // pred_fallthru
      _
    // Predicated region
    $region14: #{tpu_custom_call.1} parent=1 // pred_check
      _
    $region15: #{tpu_custom_call.1} parent=1 // pred_check_branch
      %50 = sbr.rel (0) target = $region17
    $region16: #{tpu_custom_call.1} parent=1 // pred_region
      %52 = dma.done [#allocation5], 2048
    $region17: #{tpu_custom_call.1} parent=1 // pred_fallthru
      _
    // Predicated region
    $region18: #{tpu_custom_call.1} parent=1 // pred_check
      _
    $region19: #{tpu_custom_call.1} parent=1 // pred_check_branch
      %54 = sbr.rel (0) target = $region21
    $region20: #{tpu_custom_call.1} parent=1 // pred_region
      %56 = dma.done [#allocation8], 2048
    $region21: #{tpu_custom_call.1} parent=1 // pred_fallthru
      _
    %s57 = sadd.s32 0, 0
    %s58 = smul.u32 8, %s57
    %s59 = sadd.s32 0, 0
    %s60 = smul.u32 8, %s59
    %p61 = scmp.eq.s32.totalorder 0, 0
    // Predicated region
    $region22: #{tpu_custom_call.1} parent=1 // pred_check
      %p62 = pneg %p61
    $region23: #{tpu_custom_call.1} parent=1 // pred_check_branch
      %64 = sbr.rel (%p62) target = $region25
    $region24: #{tpu_custom_call.1} parent=1 // pred_region
      %vm65 = vcmask 46080
      %66 = vst.msk [vmem:[#allocation3] sm:$0x3f] %vm65, 0.0
      %67 = vst.msk [vmem:[#allocation3 + $0x8] sm:$0x3f] %vm65, 0.0
      %68 = vst.msk [vmem:[#allocation3 + $0x10] sm:$0x3f] %vm65, 0.0
      %69 = vst.msk [vmem:[#allocation3 + $0x18] sm:$0x3f] %vm65, 0.0
      %70 = vst.msk [vmem:[#allocation3 + $0x20] sm:$0x3f] %vm65, 0.0
      %71 = vst.msk [vmem:[#allocation3 + $0x28] sm:$0x3f] %vm65, 0.0
      %72 = vst.msk [vmem:[#allocation3 + $0x30] sm:$0x3f] %vm65, 0.0
      %73 = vst.msk [vmem:[#allocation3 + $0x38] sm:$0x3f] %vm65, 0.0
    $region25: #{tpu_custom_call.1} parent=1 // pred_fallthru
      _
    %v74 = vld [vmem:[#allocation4] sm:$0xff]
    %v75 = vld [vmem:[#allocation4 + $0x8] sm:$0xff]
    %v76 = vld [vmem:[#allocation4 + $0x10] sm:$0xff]
    %v77 = vld [vmem:[#allocation4 + $0x18] sm:$0xff]
    %v78 = vld [vmem:[#allocation4 + $0x20] sm:$0xff]
    %v79 = vld [vmem:[#allocation4 + $0x28] sm:$0xff]
    %v80 = vld [vmem:[#allocation4 + $0x30] sm:$0xff]
    %v81 = vld [vmem:[#allocation4 + $0x38] sm:$0xff]
    %v82 = vld [vmem:[#allocation4 + $0x40] sm:$0xff]
    %v83 = vld [vmem:[#allocation4 + $0x48] sm:$0xff]
    %v84 = vld [vmem:[#allocation4 + $0x50] sm:$0xff]
    %v85 = vld [vmem:[#allocation4 + $0x58] sm:$0xff]
    %v86 = vld [vmem:[#allocation4 + $0x60] sm:$0xff]
    %v87 = vld [vmem:[#allocation4 + $0x68] sm:$0xff]
    %v88 = vld [vmem:[#allocation4 + $0x70] sm:$0xff]
    %v89 = vld [vmem:[#allocation4 + $0x78] sm:$0xff]
    %v90 = vld [vmem:[#allocation7] sm:$0xff]
    %v91 = vld [vmem:[#allocation7 + $0x8] sm:$0xff]
    %v92 = vld [vmem:[#allocation7 + $0x10] sm:$0xff]
    %v93 = vld [vmem:[#allocation7 + $0x18] sm:$0xff]
    %v94 = vld [vmem:[#allocation7 + $0x20] sm:$0xff]
    %v95 = vld [vmem:[#allocation7 + $0x28] sm:$0xff]
    %v96 = vld [vmem:[#allocation7 + $0x30] sm:$0xff]
    %v97 = vld [vmem:[#allocation7 + $0x38] sm:$0xff]
    %v98 = vld [vmem:[#allocation7 + $0x40] sm:$0xff]
    %v99 = vld [vmem:[#allocation7 + $0x48] sm:$0xff]
    %v100 = vld [vmem:[#allocation7 + $0x50] sm:$0xff]
    %v101 = vld [vmem:[#allocation7 + $0x58] sm:$0xff]
    %v102 = vld [vmem:[#allocation7 + $0x60] sm:$0xff]
    %v103 = vld [vmem:[#allocation7 + $0x68] sm:$0xff]
    %v104 = vld [vmem:[#allocation7 + $0x70] sm:$0xff]
    %v105 = vld [vmem:[#allocation7 + $0x78] sm:$0xff]
    %v106 = vmul.f32 %v74, %v74
    %v107 = vmul.f32 %v75, %v75
    %v108 = vmul.f32 %v76, %v76
    %v109 = vmul.f32 %v77, %v77
    %v110 = vmul.f32 %v78, %v78
    %v111 = vmul.f32 %v79, %v79
    %v112 = vmul.f32 %v80, %v80
    %v113 = vmul.f32 %v81, %v81
    %v114 = vmul.f32 %v82, %v82
    %v115 = vmul.f32 %v83, %v83
    %v116 = vmul.f32 %v84, %v84
    %v117 = vmul.f32 %v85, %v85
    %v118 = vmul.f32 %v86, %v86
    %v119 = vmul.f32 %v87, %v87
    %v120 = vmul.f32 %v88, %v88
    %v121 = vmul.f32 %v89, %v89
    %v122 = vmul.f32 %v90, %v90
    %v123 = vmul.f32 %v91, %v91
    %v124 = vmul.f32 %v92, %v92
    %v125 = vmul.f32 %v93, %v93
    %v126 = vmul.f32 %v94, %v94
    %v127 = vmul.f32 %v95, %v95
    %v128 = vmul.f32 %v96, %v96
    %v129 = vmul.f32 %v97, %v97
    %v130 = vmul.f32 %v98, %v98
    %v131 = vmul.f32 %v99, %v99
    %v132 = vmul.f32 %v100, %v100
    %v133 = vmul.f32 %v101, %v101
    %v134 = vmul.f32 %v102, %v102
    %v135 = vmul.f32 %v103, %v103
    %v136 = vmul.f32 %v104, %v104
    %v137 = vmul.f32 %v105, %v105
    %v138 = vmul.f32 %v74, %v90
    %v139 = vmul.f32 %v75, %v91
    %v140 = vmul.f32 %v76, %v92
    %v141 = vmul.f32 %v77, %v93
    %v142 = vmul.f32 %v78, %v94
    %v143 = vmul.f32 %v79, %v95
    %v144 = vmul.f32 %v80, %v96
    %v145 = vmul.f32 %v81, %v97
    %v146 = vmul.f32 %v82, %v98
    %v147 = vmul.f32 %v83, %v99
    %v148 = vmul.f32 %v84, %v100
    %v149 = vmul.f32 %v85, %v101
    %v150 = vmul.f32 %v86, %v102
    %v151 = vmul.f32 %v87, %v103
    %v152 = vmul.f32 %v88, %v104
    %v153 = vmul.f32 %v89, %v105
    %v154 = vld [vmem:[%s2] sm:$0xff]
    %v155 = vld [vmem:[%s2 + $0x8] sm:$0xff]
    %vm156 = vcmask 130048
    %v158 = vsel %vm156, %v74, 0
    %v161 = vsel %vm156, %v75, 0
    %v164 = vsel %vm156, %v76, 0
    %v167 = vsel %vm156, %v77, 0
    %v170 = vsel %vm156, %v78, 0
    %v173 = vsel %vm156, %v79, 0
    %v176 = vsel %vm156, %v80, 0
    %v179 = vsel %vm156, %v81, 0
    %v182 = vsel %vm156, %v82, 0
    %v185 = vsel %vm156, %v83, 0
    %v188 = vsel %vm156, %v84, 0
    %v191 = vsel %vm156, %v85, 0
    %v194 = vsel %vm156, %v86, 0
    %v197 = vsel %vm156, %v87, 0
    %v200 = vsel %vm156, %v88, 0
    %v203 = vsel %vm156, %v89, 0
    %v206 = vsel %vm156, %v90, 0
    %v209 = vsel %vm156, %v91, 0
    %v212 = vsel %vm156, %v92, 0
    %v215 = vsel %vm156, %v93, 0
    %v218 = vsel %vm156, %v94, 0
    %v221 = vsel %vm156, %v95, 0
    %v224 = vsel %vm156, %v96, 0
    %v227 = vsel %vm156, %v97, 0
    %v230 = vsel %vm156, %v98, 0
    %v233 = vsel %vm156, %v99, 0
    %v236 = vsel %vm156, %v100, 0
    %v239 = vsel %vm156, %v101, 0
    %v242 = vsel %vm156, %v102, 0
    %v245 = vsel %vm156, %v103, 0
    %v248 = vsel %vm156, %v104, 0
    %v251 = vsel %vm156, %v105, 0
    %v254 = vsel %vm156, %v106, 0
    %v257 = vsel %vm156, %v107, 0
    %v260 = vsel %vm156, %v108, 0
    %v263 = vsel %vm156, %v109, 0
    %v266 = vsel %vm156, %v110, 0
    %v269 = vsel %vm156, %v111, 0
    %v272 = vsel %vm156, %v112, 0
    %v275 = vsel %vm156, %v113, 0
    %v278 = vsel %vm156, %v114, 0
    %v281 = vsel %vm156, %v115, 0
    %v284 = vsel %vm156, %v116, 0
    %v287 = vsel %vm156, %v117, 0
    %v290 = vsel %vm156, %v118, 0
    %v293 = vsel %vm156, %v119, 0
    %v296 = vsel %vm156, %v120, 0
    %v299 = vsel %vm156, %v121, 0
    %v302 = vsel %vm156, %v122, 0
    %v305 = vsel %vm156, %v123, 0
    %v308 = vsel %vm156, %v124, 0
    %v311 = vsel %vm156, %v125, 0
    %v314 = vsel %vm156, %v126, 0
    %v317 = vsel %vm156, %v127, 0
    %v320 = vsel %vm156, %v128, 0
    %v323 = vsel %vm156, %v129, 0
    %v326 = vsel %vm156, %v130, 0
    %v329 = vsel %vm156, %v131, 0
    %v332 = vsel %vm156, %v132, 0
    %v335 = vsel %vm156, %v133, 0
    %v338 = vsel %vm156, %v134, 0
    %v341 = vsel %vm156, %v135, 0
    %v344 = vsel %vm156, %v136, 0
    %v347 = vsel %vm156, %v137, 0
    %v350 = vsel %vm156, %v138, 0
    %v353 = vsel %vm156, %v139, 0
    %v356 = vsel %vm156, %v140, 0
    %v359 = vsel %vm156, %v141, 0
    %v362 = vsel %vm156, %v142, 0
    %v365 = vsel %vm156, %v143, 0
    %v368 = vsel %vm156, %v144, 0
    %v371 = vsel %vm156, %v145, 0
    %v374 = vsel %vm156, %v146, 0
    %v377 = vsel %vm156, %v147, 0
    %v380 = vsel %vm156, %v148, 0
    %v383 = vsel %vm156, %v149, 0
    %v386 = vsel %vm156, %v150, 0
    %v389 = vsel %vm156, %v151, 0
    %v392 = vsel %vm156, %v152, 0
    %v395 = vsel %vm156, %v153, 0
    %397 = vmatpush.msra.mxu0 0.0
    %398 = vmatpush.msra.mxu0 0.0
    %399 = vmatpush.msra.mxu0 0.0
    %400 = vmatpush.msra.mxu0 0.0
    %401 = vmatpush.msra.mxu0 0.0
    %402 = vmatpush.msra.mxu0 0.0
    %403 = vmatpush.msra.mxu0 0.0
    %404 = vmatpush.msra.mxu0 0.0
    %405 = vmatpush.msra.mxu0 0.0
    %406 = vmatpush.msra.mxu0 0.0
    %407 = vmatpush.msra.mxu0 0.0
    %408 = vmatpush.msra.mxu0 0.0
    %409 = vmatpush.msra.mxu0 0.0
    %410 = vmatpush.msra.mxu0 0.0
    %411 = vmatpush.msra.mxu0 %v155
    %412 = vmatpush.msra.mxu0 %v154
    %413 = vmatmul.f32.gmra.mxu0 %v158
    %v414 = vpop.f32.mrf.mxu0
    %v415 = vadd.f32 0.0, %v414
    %416 = vmatmul.f32.gmra.mxu0 %v161
    %v417 = vpop.f32.mrf.mxu0
    %v418 = vadd.f32 0.0, %v417
    %419 = vmatmul.f32.gmra.mxu0 %v164
    %v420 = vpop.f32.mrf.mxu0
    %v421 = vadd.f32 0.0, %v420
    %422 = vmatmul.f32.gmra.mxu0 %v167
    %v423 = vpop.f32.mrf.mxu0
    %v424 = vadd.f32 0.0, %v423
    %425 = vmatmul.f32.gmra.mxu0 %v170
    %v426 = vpop.f32.mrf.mxu0
    %v427 = vadd.f32 0.0, %v426
    %428 = vmatmul.f32.gmra.mxu0 %v173
    %v429 = vpop.f32.mrf.mxu0
    %v430 = vadd.f32 0.0, %v429
    %431 = vmatmul.f32.gmra.mxu0 %v176
    %v432 = vpop.f32.mrf.mxu0
    %v433 = vadd.f32 0.0, %v432
    %434 = vmatmul.f32.gmra.mxu0 %v179
    %v435 = vpop.f32.mrf.mxu0
    %v436 = vadd.f32 0.0, %v435
    %437 = vmatmul.f32.gmra.mxu0 %v182
    %v438 = vpop.f32.mrf.mxu0
    %v439 = vadd.f32 0.0, %v438
    %440 = vmatmul.f32.gmra.mxu0 %v185
    %v441 = vpop.f32.mrf.mxu0
    %v442 = vadd.f32 0.0, %v441
    %443 = vmatmul.f32.gmra.mxu0 %v188
    %v444 = vpop.f32.mrf.mxu0
    %v445 = vadd.f32 0.0, %v444
    %446 = vmatmul.f32.gmra.mxu0 %v191
    %v447 = vpop.f32.mrf.mxu0
    %v448 = vadd.f32 0.0, %v447
    %449 = vmatmul.f32.gmra.mxu0 %v194
    %v450 = vpop.f32.mrf.mxu0
    %v451 = vadd.f32 0.0, %v450
    %452 = vmatmul.f32.gmra.mxu0 %v197
    %v453 = vpop.f32.mrf.mxu0
    %v454 = vadd.f32 0.0, %v453
    %455 = vmatmul.f32.gmra.mxu0 %v200
    %v456 = vpop.f32.mrf.mxu0
    %v457 = vadd.f32 0.0, %v456
    %458 = vmatmul.f32.gmra.mxu0 %v203
    %v459 = vpop.f32.mrf.mxu0
    %v460 = vadd.f32 0.0, %v459
    %461 = vmatmul.f32.gmra.mxu0 %v206
    %v462 = vpop.f32.mrf.mxu0
    %v463 = vadd.f32 0.0, %v462
    %464 = vmatmul.f32.gmra.mxu0 %v209
    %v465 = vpop.f32.mrf.mxu0
    %v466 = vadd.f32 0.0, %v465
    %467 = vmatmul.f32.gmra.mxu0 %v212
    %v468 = vpop.f32.mrf.mxu0
    %v469 = vadd.f32 0.0, %v468
    %470 = vmatmul.f32.gmra.mxu0 %v215
    %v471 = vpop.f32.mrf.mxu0
    %v472 = vadd.f32 0.0, %v471
    %473 = vmatmul.f32.gmra.mxu0 %v218
    %v474 = vpop.f32.mrf.mxu0
    %v475 = vadd.f32 0.0, %v474
    %476 = vmatmul.f32.gmra.mxu0 %v221
    %v477 = vpop.f32.mrf.mxu0
    %v478 = vadd.f32 0.0, %v477
    %479 = vmatmul.f32.gmra.mxu0 %v224
    %v480 = vpop.f32.mrf.mxu0
    %v481 = vadd.f32 0.0, %v480
    %482 = vmatmul.f32.gmra.mxu0 %v227
    %v483 = vpop.f32.mrf.mxu0
    %v484 = vadd.f32 0.0, %v483
    %485 = vmatmul.f32.gmra.mxu0 %v230
    %v486 = vpop.f32.mrf.mxu0
    %v487 = vadd.f32 0.0, %v486
    %488 = vmatmul.f32.gmra.mxu0 %v233
    %v489 = vpop.f32.mrf.mxu0
    %v490 = vadd.f32 0.0, %v489
    %491 = vmatmul.f32.gmra.mxu0 %v236
    %v492 = vpop.f32.mrf.mxu0
    %v493 = vadd.f32 0.0, %v492
    %494 = vmatmul.f32.gmra.mxu0 %v239
    %v495 = vpop.f32.mrf.mxu0
    %v496 = vadd.f32 0.0, %v495
    %497 = vmatmul.f32.gmra.mxu0 %v242
    %v498 = vpop.f32.mrf.mxu0
    %v499 = vadd.f32 0.0, %v498
    %500 = vmatmul.f32.gmra.mxu0 %v245
    %v501 = vpop.f32.mrf.mxu0
    %v502 = vadd.f32 0.0, %v501
    %503 = vmatmul.f32.gmra.mxu0 %v248
    %v504 = vpop.f32.mrf.mxu0
    %v505 = vadd.f32 0.0, %v504
    %506 = vmatmul.f32.gmra.mxu0 %v251
    %v507 = vpop.f32.mrf.mxu0
    %v508 = vadd.f32 0.0, %v507
    %509 = vmatmul.f32.gmra.mxu0 %v254
    %v510 = vpop.f32.mrf.mxu0
    %v511 = vadd.f32 0.0, %v510
    %512 = vmatmul.f32.gmra.mxu0 %v257
    %v513 = vpop.f32.mrf.mxu0
    %v514 = vadd.f32 0.0, %v513
    %515 = vmatmul.f32.gmra.mxu0 %v260
    %v516 = vpop.f32.mrf.mxu0
    %v517 = vadd.f32 0.0, %v516
    %518 = vmatmul.f32.gmra.mxu0 %v263
    %v519 = vpop.f32.mrf.mxu0
    %v520 = vadd.f32 0.0, %v519
    %521 = vmatmul.f32.gmra.mxu0 %v266
    %v522 = vpop.f32.mrf.mxu0
    %v523 = vadd.f32 0.0, %v522
    %524 = vmatmul.f32.gmra.mxu0 %v269
    %v525 = vpop.f32.mrf.mxu0
    %v526 = vadd.f32 0.0, %v525
    %527 = vmatmul.f32.gmra.mxu0 %v272
    %v528 = vpop.f32.mrf.mxu0
    %v529 = vadd.f32 0.0, %v528
    %530 = vmatmul.f32.gmra.mxu0 %v275
    %v531 = vpop.f32.mrf.mxu0
    %v532 = vadd.f32 0.0, %v531
    %533 = vmatmul.f32.gmra.mxu0 %v278
    %v534 = vpop.f32.mrf.mxu0
    %v535 = vadd.f32 0.0, %v534
    %536 = vmatmul.f32.gmra.mxu0 %v281
    %v537 = vpop.f32.mrf.mxu0
    %v538 = vadd.f32 0.0, %v537
    %539 = vmatmul.f32.gmra.mxu0 %v284
    %v540 = vpop.f32.mrf.mxu0
    %v541 = vadd.f32 0.0, %v540
    %542 = vmatmul.f32.gmra.mxu0 %v287
    %v543 = vpop.f32.mrf.mxu0
    %v544 = vadd.f32 0.0, %v543
    %545 = vmatmul.f32.gmra.mxu0 %v290
    %v546 = vpop.f32.mrf.mxu0
    %v547 = vadd.f32 0.0, %v546
    %548 = vmatmul.f32.gmra.mxu0 %v293
    %v549 = vpop.f32.mrf.mxu0
    %v550 = vadd.f32 0.0, %v549
    %551 = vmatmul.f32.gmra.mxu0 %v296
    %v552 = vpop.f32.mrf.mxu0
    %v553 = vadd.f32 0.0, %v552
    %554 = vmatmul.f32.gmra.mxu0 %v299
    %v555 = vpop.f32.mrf.mxu0
    %v556 = vadd.f32 0.0, %v555
    %557 = vmatmul.f32.gmra.mxu0 %v302
    %v558 = vpop.f32.mrf.mxu0
    %v559 = vadd.f32 0.0, %v558
    %560 = vmatmul.f32.gmra.mxu0 %v305
    %v561 = vpop.f32.mrf.mxu0
    %v562 = vadd.f32 0.0, %v561
    %563 = vmatmul.f32.gmra.mxu0 %v308
    %v564 = vpop.f32.mrf.mxu0
    %v565 = vadd.f32 0.0, %v564
    %566 = vmatmul.f32.gmra.mxu0 %v311
    %v567 = vpop.f32.mrf.mxu0
    %v568 = vadd.f32 0.0, %v567
    %569 = vmatmul.f32.gmra.mxu0 %v314
    %v570 = vpop.f32.mrf.mxu0
    %v571 = vadd.f32 0.0, %v570
    %572 = vmatmul.f32.gmra.mxu0 %v317
    %v573 = vpop.f32.mrf.mxu0
    %v574 = vadd.f32 0.0, %v573
    %575 = vmatmul.f32.gmra.mxu0 %v320
    %v576 = vpop.f32.mrf.mxu0
    %v577 = vadd.f32 0.0, %v576
    %578 = vmatmul.f32.gmra.mxu0 %v323
    %v579 = vpop.f32.mrf.mxu0
    %v580 = vadd.f32 0.0, %v579
    %581 = vmatmul.f32.gmra.mxu0 %v326
    %v582 = vpop.f32.mrf.mxu0
    %v583 = vadd.f32 0.0, %v582
    %584 = vmatmul.f32.gmra.mxu0 %v329
    %v585 = vpop.f32.mrf.mxu0
    %v586 = vadd.f32 0.0, %v585
    %587 = vmatmul.f32.gmra.mxu0 %v332
    %v588 = vpop.f32.mrf.mxu0
    %v589 = vadd.f32 0.0, %v588
    %590 = vmatmul.f32.gmra.mxu0 %v335
    %v591 = vpop.f32.mrf.mxu0
    %v592 = vadd.f32 0.0, %v591
    %593 = vmatmul.f32.gmra.mxu0 %v338
    %v594 = vpop.f32.mrf.mxu0
    %v595 = vadd.f32 0.0, %v594
    %596 = vmatmul.f32.gmra.mxu0 %v341
    %v597 = vpop.f32.mrf.mxu0
    %v598 = vadd.f32 0.0, %v597
    %599 = vmatmul.f32.gmra.mxu0 %v344
    %v600 = vpop.f32.mrf.mxu0
    %v601 = vadd.f32 0.0, %v600
    %602 = vmatmul.f32.gmra.mxu0 %v347
    %v603 = vpop.f32.mrf.mxu0
    %v604 = vadd.f32 0.0, %v603
    %605 = vmatmul.f32.gmra.mxu0 %v350
    %v606 = vpop.f32.mrf.mxu0
    %v607 = vadd.f32 0.0, %v606
    %608 = vmatmul.f32.gmra.mxu0 %v353
    %v609 = vpop.f32.mrf.mxu0
    %v610 = vadd.f32 0.0, %v609
    %611 = vmatmul.f32.gmra.mxu0 %v356
    %v612 = vpop.f32.mrf.mxu0
    %v613 = vadd.f32 0.0, %v612
    %614 = vmatmul.f32.gmra.mxu0 %v359
    %v615 = vpop.f32.mrf.mxu0
    %v616 = vadd.f32 0.0, %v615
    %617 = vmatmul.f32.gmra.mxu0 %v362
    %v618 = vpop.f32.mrf.mxu0
    %v619 = vadd.f32 0.0, %v618
    %620 = vmatmul.f32.gmra.mxu0 %v365
    %v621 = vpop.f32.mrf.mxu0
    %v622 = vadd.f32 0.0, %v621
    %623 = vmatmul.f32.gmra.mxu0 %v368
    %v624 = vpop.f32.mrf.mxu0
    %v625 = vadd.f32 0.0, %v624
    %626 = vmatmul.f32.gmra.mxu0 %v371
    %v627 = vpop.f32.mrf.mxu0
    %v628 = vadd.f32 0.0, %v627
    %629 = vmatmul.f32.gmra.mxu0 %v374
    %v630 = vpop.f32.mrf.mxu0
    %v631 = vadd.f32 0.0, %v630
    %632 = vmatmul.f32.gmra.mxu0 %v377
    %v633 = vpop.f32.mrf.mxu0
    %v634 = vadd.f32 0.0, %v633
    %635 = vmatmul.f32.gmra.mxu0 %v380
    %v636 = vpop.f32.mrf.mxu0
    %v637 = vadd.f32 0.0, %v636
    %638 = vmatmul.f32.gmra.mxu0 %v383
    %v639 = vpop.f32.mrf.mxu0
    %v640 = vadd.f32 0.0, %v639
    %641 = vmatmul.f32.gmra.mxu0 %v386
    %v642 = vpop.f32.mrf.mxu0
    %v643 = vadd.f32 0.0, %v642
    %644 = vmatmul.f32.gmra.mxu0 %v389
    %v645 = vpop.f32.mrf.mxu0
    %v646 = vadd.f32 0.0, %v645
    %647 = vmatmul.f32.gmra.mxu0 %v392
    %v648 = vpop.f32.mrf.mxu0
    %v649 = vadd.f32 0.0, %v648
    %650 = vmatmul.f32.gmra.mxu0 %v395
    %v651 = vpop.f32.mrf.mxu0
    %v652 = vadd.f32 0.0, %v651
    %653 = vdwg.mxu0
    %vm654 = vcmask 48128
    %655 = vst.msk [vmem:[#allocation2] sm:$0xff] %vm654, %v415
    %656 = vst.msk [vmem:[#allocation2 + $0x8] sm:$0xff] %vm654, %v418
    %657 = vst.msk [vmem:[#allocation2 + $0x10] sm:$0xff] %vm654, %v421
    %658 = vst.msk [vmem:[#allocation2 + $0x18] sm:$0xff] %vm654, %v424
    %659 = vst.msk [vmem:[#allocation2 + $0x20] sm:$0xff] %vm654, %v427
    %660 = vst.msk [vmem:[#allocation2 + $0x28] sm:$0xff] %vm654, %v430
    %661 = vst.msk [vmem:[#allocation2 + $0x30] sm:$0xff] %vm654, %v433
    %662 = vst.msk [vmem:[#allocation2 + $0x38] sm:$0xff] %vm654, %v436
    %663 = vst.msk [vmem:[#allocation2 + $0x40] sm:$0xff] %vm654, %v439
    %664 = vst.msk [vmem:[#allocation2 + $0x48] sm:$0xff] %vm654, %v442
    %665 = vst.msk [vmem:[#allocation2 + $0x50] sm:$0xff] %vm654, %v445
    %666 = vst.msk [vmem:[#allocation2 + $0x58] sm:$0xff] %vm654, %v448
    %667 = vst.msk [vmem:[#allocation2 + $0x60] sm:$0xff] %vm654, %v451
    %668 = vst.msk [vmem:[#allocation2 + $0x68] sm:$0xff] %vm654, %v454
    %669 = vst.msk [vmem:[#allocation2 + $0x70] sm:$0xff] %vm654, %v457
    %670 = vst.msk [vmem:[#allocation2 + $0x78] sm:$0xff] %vm654, %v460
    %671 = vst.msk [vmem:[#allocation2 + $0x80] sm:$0xff] %vm654, %v463
    %672 = vst.msk [vmem:[#allocation2 + $0x88] sm:$0xff] %vm654, %v466
    %673 = vst.msk [vmem:[#allocation2 + $0x90] sm:$0xff] %vm654, %v469
    %674 = vst.msk [vmem:[#allocation2 + $0x98] sm:$0xff] %vm654, %v472
    %675 = vst.msk [vmem:[#allocation2 + $0xa0] sm:$0xff] %vm654, %v475
    %676 = vst.msk [vmem:[#allocation2 + $0xa8] sm:$0xff] %vm654, %v478
    %677 = vst.msk [vmem:[#allocation2 + $0xb0] sm:$0xff] %vm654, %v481
    %678 = vst.msk [vmem:[#allocation2 + $0xb8] sm:$0xff] %vm654, %v484
    %679 = vst.msk [vmem:[#allocation2 + $0xc0] sm:$0xff] %vm654, %v487
    %680 = vst.msk [vmem:[#allocation2 + $0xc8] sm:$0xff] %vm654, %v490
    %681 = vst.msk [vmem:[#allocation2 + $0xd0] sm:$0xff] %vm654, %v493
    %682 = vst.msk [vmem:[#allocation2 + $0xd8] sm:$0xff] %vm654, %v496
    %683 = vst.msk [vmem:[#allocation2 + $0xe0] sm:$0xff] %vm654, %v499
    %684 = vst.msk [vmem:[#allocation2 + $0xe8] sm:$0xff] %vm654, %v502
    %685 = vst.msk [vmem:[#allocation2 + $0xf0] sm:$0xff] %vm654, %v505
    %686 = vst.msk [vmem:[#allocation2 + $0xf8] sm:$0xff] %vm654, %v508
    %687 = vst.msk [vmem:[#allocation2 + $0x100] sm:$0xff] %vm654, %v511
    %688 = vst.msk [vmem:[#allocation2 + $0x108] sm:$0xff] %vm654, %v514
    %689 = vst.msk [vmem:[#allocation2 + $0x110] sm:$0xff] %vm654, %v517
    %690 = vst.msk [vmem:[#allocation2 + $0x118] sm:$0xff] %vm654, %v520
    %691 = vst.msk [vmem:[#allocation2 + $0x120] sm:$0xff] %vm654, %v523
    %692 = vst.msk [vmem:[#allocation2 + $0x128] sm:$0xff] %vm654, %v526
    %693 = vst.msk [vmem:[#allocation2 + $0x130] sm:$0xff] %vm654, %v529
    %694 = vst.msk [vmem:[#allocation2 + $0x138] sm:$0xff] %vm654, %v532
    %695 = vst.msk [vmem:[#allocation2 + $0x140] sm:$0xff] %vm654, %v535
    %696 = vst.msk [vmem:[#allocation2 + $0x148] sm:$0xff] %vm654, %v538
    %697 = vst.msk [vmem:[#allocation2 + $0x150] sm:$0xff] %vm654, %v541
    %698 = vst.msk [vmem:[#allocation2 + $0x158] sm:$0xff] %vm654, %v544
    %699 = vst.msk [vmem:[#allocation2 + $0x160] sm:$0xff] %vm654, %v547
    %700 = vst.msk [vmem:[#allocation2 + $0x168] sm:$0xff] %vm654, %v550
    %701 = vst.msk [vmem:[#allocation2 + $0x170] sm:$0xff] %vm654, %v553
    %702 = vst.msk [vmem:[#allocation2 + $0x178] sm:$0xff] %vm654, %v556
    %703 = vst.msk [vmem:[#allocation2 + $0x180] sm:$0xff] %vm654, %v559
    %704 = vst.msk [vmem:[#allocation2 + $0x188] sm:$0xff] %vm654, %v562
    %705 = vst.msk [vmem:[#allocation2 + $0x190] sm:$0xff] %vm654, %v565
    %706 = vst.msk [vmem:[#allocation2 + $0x198] sm:$0xff] %vm654, %v568
    %707 = vst.msk [vmem:[#allocation2 + $0x1a0] sm:$0xff] %vm654, %v571
    %708 = vst.msk [vmem:[#allocation2 + $0x1a8] sm:$0xff] %vm654, %v574
    %709 = vst.msk [vmem:[#allocation2 + $0x1b0] sm:$0xff] %vm654, %v577
    %710 = vst.msk [vmem:[#allocation2 + $0x1b8] sm:$0xff] %vm654, %v580
    %711 = vst.msk [vmem:[#allocation2 + $0x1c0] sm:$0xff] %vm654, %v583
    %712 = vst.msk [vmem:[#allocation2 + $0x1c8] sm:$0xff] %vm654, %v586
    %713 = vst.msk [vmem:[#allocation2 + $0x1d0] sm:$0xff] %vm654, %v589
    %714 = vst.msk [vmem:[#allocation2 + $0x1d8] sm:$0xff] %vm654, %v592
    %715 = vst.msk [vmem:[#allocation2 + $0x1e0] sm:$0xff] %vm654, %v595
    %716 = vst.msk [vmem:[#allocation2 + $0x1e8] sm:$0xff] %vm654, %v598
    %717 = vst.msk [vmem:[#allocation2 + $0x1f0] sm:$0xff] %vm654, %v601
    %718 = vst.msk [vmem:[#allocation2 + $0x1f8] sm:$0xff] %vm654, %v604
    %719 = vst.msk [vmem:[#allocation2 + $0x200] sm:$0xff] %vm654, %v607
    %720 = vst.msk [vmem:[#allocation2 + $0x208] sm:$0xff] %vm654, %v610
    %721 = vst.msk [vmem:[#allocation2 + $0x210] sm:$0xff] %vm654, %v613
    %722 = vst.msk [vmem:[#allocation2 + $0x218] sm:$0xff] %vm654, %v616
    %723 = vst.msk [vmem:[#allocation2 + $0x220] sm:$0xff] %vm654, %v619
    %724 = vst.msk [vmem:[#allocation2 + $0x228] sm:$0xff] %vm654, %v622
    %725 = vst.msk [vmem:[#allocation2 + $0x230] sm:$0xff] %vm654, %v625
    %726 = vst.msk [vmem:[#allocation2 + $0x238] sm:$0xff] %vm654, %v628
    %727 = vst.msk [vmem:[#allocation2 + $0x240] sm:$0xff] %vm654, %v631
    %728 = vst.msk [vmem:[#allocation2 + $0x248] sm:$0xff] %vm654, %v634
    %729 = vst.msk [vmem:[#allocation2 + $0x250] sm:$0xff] %vm654, %v637
    %730 = vst.msk [vmem:[#allocation2 + $0x258] sm:$0xff] %vm654, %v640
    %731 = vst.msk [vmem:[#allocation2 + $0x260] sm:$0xff] %vm654, %v643
    %732 = vst.msk [vmem:[#allocation2 + $0x268] sm:$0xff] %vm654, %v646
    %733 = vst.msk [vmem:[#allocation2 + $0x270] sm:$0xff] %vm654, %v649
    %734 = vst.msk [vmem:[#allocation2 + $0x278] sm:$0xff] %vm654, %v652
    %v735 = vld [vmem:[#allocation2] sm:$0x3f]
    %v736 = vld [vmem:[#allocation2 + $0x10] sm:$0x3f]
    %v737 = vld [vmem:[#allocation2 + $0x20] sm:$0x3f]
    %v738 = vld [vmem:[#allocation2 + $0x30] sm:$0x3f]
    %v739 = vld [vmem:[#allocation2 + $0x40] sm:$0x3f]
    %v740 = vld [vmem:[#allocation2 + $0x50] sm:$0x3f]
    %v741 = vld [vmem:[#allocation2 + $0x60] sm:$0x3f]
    %v742 = vld [vmem:[#allocation2 + $0x70] sm:$0x3f]
    %v743 = vld [vmem:[#allocation2 + $0x80] sm:$0x3f]
    %v744 = vld [vmem:[#allocation2 + $0x90] sm:$0x3f]
    %v745 = vld [vmem:[#allocation2 + $0xa0] sm:$0x3f]
    %v746 = vld [vmem:[#allocation2 + $0xb0] sm:$0x3f]
    %v747 = vld [vmem:[#allocation2 + $0xc0] sm:$0x3f]
    %v748 = vld [vmem:[#allocation2 + $0xd0] sm:$0x3f]
    %v749 = vld [vmem:[#allocation2 + $0xe0] sm:$0x3f]
    %v750 = vld [vmem:[#allocation2 + $0xf0] sm:$0x3f]
    %v751 = vld [vmem:[#allocation2 + $0x100] sm:$0x3f]
    %v752 = vld [vmem:[#allocation2 + $0x110] sm:$0x3f]
    %v753 = vld [vmem:[#allocation2 + $0x120] sm:$0x3f]
    %v754 = vld [vmem:[#allocation2 + $0x130] sm:$0x3f]
    %v755 = vld [vmem:[#allocation2 + $0x140] sm:$0x3f]
    %v756 = vld [vmem:[#allocation2 + $0x150] sm:$0x3f]
    %v757 = vld [vmem:[#allocation2 + $0x160] sm:$0x3f]
    %v758 = vld [vmem:[#allocation2 + $0x170] sm:$0x3f]
    %v759 = vld [vmem:[#allocation2 + $0x180] sm:$0x3f]
    %v760 = vld [vmem:[#allocation2 + $0x190] sm:$0x3f]
    %v761 = vld [vmem:[#allocation2 + $0x1a0] sm:$0x3f]
    %v762 = vld [vmem:[#allocation2 + $0x1b0] sm:$0x3f]
    %v763 = vld [vmem:[#allocation2 + $0x1c0] sm:$0x3f]
    %v764 = vld [vmem:[#allocation2 + $0x1d0] sm:$0x3f]
    %v765 = vld [vmem:[#allocation2 + $0x1e0] sm:$0x3f]
    %v766 = vld [vmem:[#allocation2 + $0x1f0] sm:$0x3f]
    %v767 = vld [vmem:[#allocation2 + $0x200] sm:$0x3f]
    %v768 = vld [vmem:[#allocation2 + $0x210] sm:$0x3f]
    %v769 = vld [vmem:[#allocation2 + $0x220] sm:$0x3f]
    %v770 = vld [vmem:[#allocation2 + $0x230] sm:$0x3f]
    %v771 = vld [vmem:[#allocation2 + $0x240] sm:$0x3f]
    %v772 = vld [vmem:[#allocation2 + $0x250] sm:$0x3f]
    %v773 = vld [vmem:[#allocation2 + $0x260] sm:$0x3f]
    %v774 = vld [vmem:[#allocation2 + $0x270] sm:$0x3f]
    %v775 = vmul.f32 %v735, 0.0010283801
    %v776 = vmul.f32 %v736, 0.0010283801
    %v777 = vmul.f32 %v737, 0.0010283801
    %v778 = vmul.f32 %v738, 0.0010283801
    %v779 = vmul.f32 %v739, 0.0010283801
    %v780 = vmul.f32 %v740, 0.0010283801
    %v781 = vmul.f32 %v741, 0.0010283801
    %v782 = vmul.f32 %v742, 0.0010283801
    %v783 = vmul.f32 %v743, 0.0010283801
    %v784 = vmul.f32 %v744, 0.0010283801
    %v785 = vmul.f32 %v745, 0.0010283801
    %v786 = vmul.f32 %v746, 0.0010283801
    %v787 = vmul.f32 %v747, 0.0010283801
    %v788 = vmul.f32 %v748, 0.0010283801
    %v789 = vmul.f32 %v749, 0.0010283801
    %v790 = vmul.f32 %v750, 0.0010283801
    %v791 = vmul.f32 %v751, 0.0010283801
    %v792 = vmul.f32 %v752, 0.0010283801
    %v793 = vmul.f32 %v753, 0.0010283801
    %v794 = vmul.f32 %v754, 0.0010283801
    %v795 = vmul.f32 %v755, 0.0010283801
    %v796 = vmul.f32 %v756, 0.0010283801
    %v797 = vmul.f32 %v757, 0.0010283801
    %v798 = vmul.f32 %v758, 0.0010283801
    %v799 = vmul.f32 %v759, 0.0010283801
    %v800 = vmul.f32 %v760, 0.0010283801
    %v801 = vmul.f32 %v761, 0.0010283801
    %v802 = vmul.f32 %v762, 0.0010283801
    %v803 = vmul.f32 %v763, 0.0010283801
    %v804 = vmul.f32 %v764, 0.0010283801
    %v805 = vmul.f32 %v765, 0.0010283801
    %v806 = vmul.f32 %v766, 0.0010283801
    %v807 = vmul.f32 %v767, 0.0010283801
    %v808 = vmul.f32 %v768, 0.0010283801
    %v809 = vmul.f32 %v769, 0.0010283801
    %v810 = vmul.f32 %v770, 0.0010283801
    %v811 = vmul.f32 %v771, 0.0010283801
    %v812 = vmul.f32 %v772, 0.0010283801
    %v813 = vmul.f32 %v773, 0.0010283801
    %v814 = vmul.f32 %v774, 0.0010283801
    %v815 = vld [vmem:[#allocation2 + $0x1] sm:$0x3f]
    %v816 = vld [vmem:[#allocation2 + $0x11] sm:$0x3f]
    %v817 = vld [vmem:[#allocation2 + $0x21] sm:$0x3f]
    %v818 = vld [vmem:[#allocation2 + $0x31] sm:$0x3f]
    %v819 = vld [vmem:[#allocation2 + $0x41] sm:$0x3f]
    %v820 = vld [vmem:[#allocation2 + $0x51] sm:$0x3f]
    %v821 = vld [vmem:[#allocation2 + $0x61] sm:$0x3f]
    %v822 = vld [vmem:[#allocation2 + $0x71] sm:$0x3f]
    %v823 = vld [vmem:[#allocation2 + $0x81] sm:$0x3f]
    %v824 = vld [vmem:[#allocation2 + $0x91] sm:$0x3f]
    %v825 = vld [vmem:[#allocation2 + $0xa1] sm:$0x3f]
    %v826 = vld [vmem:[#allocation2 + $0xb1] sm:$0x3f]
    %v827 = vld [vmem:[#allocation2 + $0xc1] sm:$0x3f]
    %v828 = vld [vmem:[#allocation2 + $0xd1] sm:$0x3f]
    %v829 = vld [vmem:[#allocation2 + $0xe1] sm:$0x3f]
    %v830 = vld [vmem:[#allocation2 + $0xf1] sm:$0x3f]
    %v831 = vld [vmem:[#allocation2 + $0x101] sm:$0x3f]
    %v832 = vld [vmem:[#allocation2 + $0x111] sm:$0x3f]
    %v833 = vld [vmem:[#allocation2 + $0x121] sm:$0x3f]
    %v834 = vld [vmem:[#allocation2 + $0x131] sm:$0x3f]
    %v835 = vld [vmem:[#allocation2 + $0x141] sm:$0x3f]
    %v836 = vld [vmem:[#allocation2 + $0x151] sm:$0x3f]
    %v837 = vld [vmem:[#allocation2 + $0x161] sm:$0x3f]
    %v838 = vld [vmem:[#allocation2 + $0x171] sm:$0x3f]
    %v839 = vld [vmem:[#allocation2 + $0x181] sm:$0x3f]
    %v840 = vld [vmem:[#allocation2 + $0x191] sm:$0x3f]
    %v841 = vld [vmem:[#allocation2 + $0x1a1] sm:$0x3f]
    %v842 = vld [vmem:[#allocation2 + $0x1b1] sm:$0x3f]
    %v843 = vld [vmem:[#allocation2 + $0x1c1] sm:$0x3f]
    %v844 = vld [vmem:[#allocation2 + $0x1d1] sm:$0x3f]
    %v845 = vld [vmem:[#allocation2 + $0x1e1] sm:$0x3f]
    %v846 = vld [vmem:[#allocation2 + $0x1f1] sm:$0x3f]
    %v847 = vld [vmem:[#allocation2 + $0x201] sm:$0x3f]
    %v848 = vld [vmem:[#allocation2 + $0x211] sm:$0x3f]
    %v849 = vld [vmem:[#allocation2 + $0x221] sm:$0x3f]
    %v850 = vld [vmem:[#allocation2 + $0x231] sm:$0x3f]
    %v851 = vld [vmem:[#allocation2 + $0x241] sm:$0x3f]
    %v852 = vld [vmem:[#allocation2 + $0x251] sm:$0x3f]
    %v853 = vld [vmem:[#allocation2 + $0x261] sm:$0x3f]
    %v854 = vld [vmem:[#allocation2 + $0x271] sm:$0x3f]
    %v855 = vmul.f32 %v815, 0.007598758
    %v856 = vmul.f32 %v816, 0.007598758
    %v857 = vmul.f32 %v817, 0.007598758
    %v858 = vmul.f32 %v818, 0.007598758
    %v859 = vmul.f32 %v819, 0.007598758
    %v860 = vmul.f32 %v820, 0.007598758
    %v861 = vmul.f32 %v821, 0.007598758
    %v862 = vmul.f32 %v822, 0.007598758
    %v863 = vmul.f32 %v823, 0.007598758
    %v864 = vmul.f32 %v824, 0.007598758
    %v865 = vmul.f32 %v825, 0.007598758
    %v866 = vmul.f32 %v826, 0.007598758
    %v867 = vmul.f32 %v827, 0.007598758
    %v868 = vmul.f32 %v828, 0.007598758
    %v869 = vmul.f32 %v829, 0.007598758
    %v870 = vmul.f32 %v830, 0.007598758
    %v871 = vmul.f32 %v831, 0.007598758
    %v872 = vmul.f32 %v832, 0.007598758
    %v873 = vmul.f32 %v833, 0.007598758
    %v874 = vmul.f32 %v834, 0.007598758
    %v875 = vmul.f32 %v835, 0.007598758
    %v876 = vmul.f32 %v836, 0.007598758
    %v877 = vmul.f32 %v837, 0.007598758
    %v878 = vmul.f32 %v838, 0.007598758
    %v879 = vmul.f32 %v839, 0.007598758
    %v880 = vmul.f32 %v840, 0.007598758
    %v881 = vmul.f32 %v841, 0.007598758
    %v882 = vmul.f32 %v842, 0.007598758
    %v883 = vmul.f32 %v843, 0.007598758
    %v884 = vmul.f32 %v844, 0.007598758
    %v885 = vmul.f32 %v845, 0.007598758
    %v886 = vmul.f32 %v846, 0.007598758
    %v887 = vmul.f32 %v847, 0.007598758
    %v888 = vmul.f32 %v848, 0.007598758
    %v889 = vmul.f32 %v849, 0.007598758
    %v890 = vmul.f32 %v850, 0.007598758
    %v891 = vmul.f32 %v851, 0.007598758
    %v892 = vmul.f32 %v852, 0.007598758
    %v893 = vmul.f32 %v853, 0.007598758
    %v894 = vmul.f32 %v854, 0.007598758
    %v895 = vadd.f32 %v775, %v855
    %v896 = vadd.f32 %v776, %v856
    %v897 = vadd.f32 %v777, %v857
    %v898 = vadd.f32 %v778, %v858
    %v899 = vadd.f32 %v779, %v859
    %v900 = vadd.f32 %v780, %v860
    %v901 = vadd.f32 %v781, %v861
    %v902 = vadd.f32 %v782, %v862
    %v903 = vadd.f32 %v783, %v863
    %v904 = vadd.f32 %v784, %v864
    %v905 = vadd.f32 %v785, %v865
    %v906 = vadd.f32 %v786, %v866
    %v907 = vadd.f32 %v787, %v867
    %v908 = vadd.f32 %v788, %v868
    %v909 = vadd.f32 %v789, %v869
    %v910 = vadd.f32 %v790, %v870
    %v911 = vadd.f32 %v791, %v871
    %v912 = vadd.f32 %v792, %v872
    %v913 = vadd.f32 %v793, %v873
    %v914 = vadd.f32 %v794, %v874
    %v915 = vadd.f32 %v795, %v875
    %v916 = vadd.f32 %v796, %v876
    %v917 = vadd.f32 %v797, %v877
    %v918 = vadd.f32 %v798, %v878
    %v919 = vadd.f32 %v799, %v879
    %v920 = vadd.f32 %v800, %v880
    %v921 = vadd.f32 %v801, %v881
    %v922 = vadd.f32 %v802, %v882
    %v923 = vadd.f32 %v803, %v883
    %v924 = vadd.f32 %v804, %v884
    %v925 = vadd.f32 %v805, %v885
    %v926 = vadd.f32 %v806, %v886
    %v927 = vadd.f32 %v807, %v887
    %v928 = vadd.f32 %v808, %v888
    %v929 = vadd.f32 %v809, %v889
    %v930 = vadd.f32 %v810, %v890
    %v931 = vadd.f32 %v811, %v891
    %v932 = vadd.f32 %v812, %v892
    %v933 = vadd.f32 %v813, %v893
    %v934 = vadd.f32 %v814, %v894
    %v935 = vld [vmem:[#allocation2 + $0x2] sm:$0x3f]
    %v936 = vld [vmem:[#allocation2 + $0x12] sm:$0x3f]
    %v937 = vld [vmem:[#allocation2 + $0x22] sm:$0x3f]
    %v938 = vld [vmem:[#allocation2 + $0x32] sm:$0x3f]
    %v939 = vld [vmem:[#allocation2 + $0x42] sm:$0x3f]
    %v940 = vld [vmem:[#allocation2 + $0x52] sm:$0x3f]
    %v941 = vld [vmem:[#allocation2 + $0x62] sm:$0x3f]
    %v942 = vld [vmem:[#allocation2 + $0x72] sm:$0x3f]
    %v943 = vld [vmem:[#allocation2 + $0x82] sm:$0x3f]
    %v944 = vld [vmem:[#allocation2 + $0x92] sm:$0x3f]
    %v945 = vld [vmem:[#allocation2 + $0xa2] sm:$0x3f]
    %v946 = vld [vmem:[#allocation2 + $0xb2] sm:$0x3f]
    %v947 = vld [vmem:[#allocation2 + $0xc2] sm:$0x3f]
    %v948 = vld [vmem:[#allocation2 + $0xd2] sm:$0x3f]
    %v949 = vld [vmem:[#allocation2 + $0xe2] sm:$0x3f]
    %v950 = vld [vmem:[#allocation2 + $0xf2] sm:$0x3f]
    %v951 = vld [vmem:[#allocation2 + $0x102] sm:$0x3f]
    %v952 = vld [vmem:[#allocation2 + $0x112] sm:$0x3f]
    %v953 = vld [vmem:[#allocation2 + $0x122] sm:$0x3f]
    %v954 = vld [vmem:[#allocation2 + $0x132] sm:$0x3f]
    %v955 = vld [vmem:[#allocation2 + $0x142] sm:$0x3f]
    %v956 = vld [vmem:[#allocation2 + $0x152] sm:$0x3f]
    %v957 = vld [vmem:[#allocation2 + $0x162] sm:$0x3f]
    %v958 = vld [vmem:[#allocation2 + $0x172] sm:$0x3f]
    %v959 = vld [vmem:[#allocation2 + $0x182] sm:$0x3f]
    %v960 = vld [vmem:[#allocation2 + $0x192] sm:$0x3f]
    %v961 = vld [vmem:[#allocation2 + $0x1a2] sm:$0x3f]
    %v962 = vld [vmem:[#allocation2 + $0x1b2] sm:$0x3f]
    %v963 = vld [vmem:[#allocation2 + $0x1c2] sm:$0x3f]
    %v964 = vld [vmem:[#allocation2 + $0x1d2] sm:$0x3f]
    %v965 = vld [vmem:[#allocation2 + $0x1e2] sm:$0x3f]
    %v966 = vld [vmem:[#allocation2 + $0x1f2] sm:$0x3f]
    %v967 = vld [vmem:[#allocation2 + $0x202] sm:$0x3f]
    %v968 = vld [vmem:[#allocation2 + $0x212] sm:$0x3f]
    %v969 = vld [vmem:[#allocation2 + $0x222] sm:$0x3f]
    %v970 = vld [vmem:[#allocation2 + $0x232] sm:$0x3f]
    %v971 = vld [vmem:[#allocation2 + $0x242] sm:$0x3f]
    %v972 = vld [vmem:[#allocation2 + $0x252] sm:$0x3f]
    %v973 = vld [vmem:[#allocation2 + $0x262] sm:$0x3f]
    %v974 = vld [vmem:[#allocation2 + $0x272] sm:$0x3f]
    %v975 = vmul.f32 %v935, 0.036000773
    %v976 = vmul.f32 %v936, 0.036000773
    %v977 = vmul.f32 %v937, 0.036000773
    %v978 = vmul.f32 %v938, 0.036000773
    %v979 = vmul.f32 %v939, 0.036000773
    %v980 = vmul.f32 %v940, 0.036000773
    %v981 = vmul.f32 %v941, 0.036000773
    %v982 = vmul.f32 %v942, 0.036000773
    %v983 = vmul.f32 %v943, 0.036000773
    %v984 = vmul.f32 %v944, 0.036000773
    %v985 = vmul.f32 %v945, 0.036000773
    %v986 = vmul.f32 %v946, 0.036000773
    %v987 = vmul.f32 %v947, 0.036000773
    %v988 = vmul.f32 %v948, 0.036000773
    %v989 = vmul.f32 %v949, 0.036000773
    %v990 = vmul.f32 %v950, 0.036000773
    %v991 = vmul.f32 %v951, 0.036000773
    %v992 = vmul.f32 %v952, 0.036000773
    %v993 = vmul.f32 %v953, 0.036000773
    %v994 = vmul.f32 %v954, 0.036000773
    %v995 = vmul.f32 %v955, 0.036000773
    %v996 = vmul.f32 %v956, 0.036000773
    %v997 = vmul.f32 %v957, 0.036000773
    %v998 = vmul.f32 %v958, 0.036000773
    %v999 = vmul.f32 %v959, 0.036000773
    %v1000 = vmul.f32 %v960, 0.036000773
    %v1001 = vmul.f32 %v961, 0.036000773
    %v1002 = vmul.f32 %v962, 0.036000773
    %v1003 = vmul.f32 %v963, 0.036000773
    %v1004 = vmul.f32 %v964, 0.036000773
    %v1005 = vmul.f32 %v965, 0.036000773
    %v1006 = vmul.f32 %v966, 0.036000773
    %v1007 = vmul.f32 %v967, 0.036000773
    %v1008 = vmul.f32 %v968, 0.036000773
    %v1009 = vmul.f32 %v969, 0.036000773
    %v1010 = vmul.f32 %v970, 0.036000773
    %v1011 = vmul.f32 %v971, 0.036000773
    %v1012 = vmul.f32 %v972, 0.036000773
    %v1013 = vmul.f32 %v973, 0.036000773
    %v1014 = vmul.f32 %v974, 0.036000773
    %v1015 = vadd.f32 %v895, %v975
    %v1016 = vadd.f32 %v896, %v976
    %v1017 = vadd.f32 %v897, %v977
    %v1018 = vadd.f32 %v898, %v978
    %v1019 = vadd.f32 %v899, %v979
    %v1020 = vadd.f32 %v900, %v980
    %v1021 = vadd.f32 %v901, %v981
    %v1022 = vadd.f32 %v902, %v982
    %v1023 = vadd.f32 %v903, %v983
    %v1024 = vadd.f32 %v904, %v984
    %v1025 = vadd.f32 %v905, %v985
    %v1026 = vadd.f32 %v906, %v986
    %v1027 = vadd.f32 %v907, %v987
    %v1028 = vadd.f32 %v908, %v988
    %v1029 = vadd.f32 %v909, %v989
    %v1030 = vadd.f32 %v910, %v990
    %v1031 = vadd.f32 %v911, %v991
    %v1032 = vadd.f32 %v912, %v992
    %v1033 = vadd.f32 %v913, %v993
    %v1034 = vadd.f32 %v914, %v994
    %v1035 = vadd.f32 %v915, %v995
    %v1036 = vadd.f32 %v916, %v996
    %v1037 = vadd.f32 %v917, %v997
    %v1038 = vadd.f32 %v918, %v998
    %v1039 = vadd.f32 %v919, %v999
    %v1040 = vadd.f32 %v920, %v1000
    %v1041 = vadd.f32 %v921, %v1001
    %v1042 = vadd.f32 %v922, %v1002
    %v1043 = vadd.f32 %v923, %v1003
    %v1044 = vadd.f32 %v924, %v1004
    %v1045 = vadd.f32 %v925, %v1005
    %v1046 = vadd.f32 %v926, %v1006
    %v1047 = vadd.f32 %v927, %v1007
    %v1048 = vadd.f32 %v928, %v1008
    %v1049 = vadd.f32 %v929, %v1009
    %v1050 = vadd.f32 %v930, %v1010
    %v1051 = vadd.f32 %v931, %v1011
    %v1052 = vadd.f32 %v932, %v1012
    %v1053 = vadd.f32 %v933, %v1013
    %v1054 = vadd.f32 %v934, %v1014
    %v1055 = vld [vmem:[#allocation2 + $0x3] sm:$0x3f]
    %v1056 = vld [vmem:[#allocation2 + $0x13] sm:$0x3f]
    %v1057 = vld [vmem:[#allocation2 + $0x23] sm:$0x3f]
    %v1058 = vld [vmem:[#allocation2 + $0x33] sm:$0x3f]
    %v1059 = vld [vmem:[#allocation2 + $0x43] sm:$0x3f]
    %v1060 = vld [vmem:[#allocation2 + $0x53] sm:$0x3f]
    %v1061 = vld [vmem:[#allocation2 + $0x63] sm:$0x3f]
    %v1062 = vld [vmem:[#allocation2 + $0x73] sm:$0x3f]
    %v1063 = vld [vmem:[#allocation2 + $0x83] sm:$0x3f]
    %v1064 = vld [vmem:[#allocation2 + $0x93] sm:$0x3f]
    %v1065 = vld [vmem:[#allocation2 + $0xa3] sm:$0x3f]
    %v1066 = vld [vmem:[#allocation2 + $0xb3] sm:$0x3f]
    %v1067 = vld [vmem:[#allocation2 + $0xc3] sm:$0x3f]
    %v1068 = vld [vmem:[#allocation2 + $0xd3] sm:$0x3f]
    %v1069 = vld [vmem:[#allocation2 + $0xe3] sm:$0x3f]
    %v1070 = vld [vmem:[#allocation2 + $0xf3] sm:$0x3f]
    %v1071 = vld [vmem:[#allocation2 + $0x103] sm:$0x3f]
    %v1072 = vld [vmem:[#allocation2 + $0x113] sm:$0x3f]
    %v1073 = vld [vmem:[#allocation2 + $0x123] sm:$0x3f]
    %v1074 = vld [vmem:[#allocation2 + $0x133] sm:$0x3f]
    %v1075 = vld [vmem:[#allocation2 + $0x143] sm:$0x3f]
    %v1076 = vld [vmem:[#allocation2 + $0x153] sm:$0x3f]
    %v1077 = vld [vmem:[#allocation2 + $0x163] sm:$0x3f]
    %v1078 = vld [vmem:[#allocation2 + $0x173] sm:$0x3f]
    %v1079 = vld [vmem:[#allocation2 + $0x183] sm:$0x3f]
    %v1080 = vld [vmem:[#allocation2 + $0x193] sm:$0x3f]
    %v1081 = vld [vmem:[#allocation2 + $0x1a3] sm:$0x3f]
    %v1082 = vld [vmem:[#allocation2 + $0x1b3] sm:$0x3f]
    %v1083 = vld [vmem:[#allocation2 + $0x1c3] sm:$0x3f]
    %v1084 = vld [vmem:[#allocation2 + $0x1d3] sm:$0x3f]
    %v1085 = vld [vmem:[#allocation2 + $0x1e3] sm:$0x3f]
    %v1086 = vld [vmem:[#allocation2 + $0x1f3] sm:$0x3f]
    %v1087 = vld [vmem:[#allocation2 + $0x203] sm:$0x3f]
    %v1088 = vld [vmem:[#allocation2 + $0x213] sm:$0x3f]
    %v1089 = vld [vmem:[#allocation2 + $0x223] sm:$0x3f]
    %v1090 = vld [vmem:[#allocation2 + $0x233] sm:$0x3f]
    %v1091 = vld [vmem:[#allocation2 + $0x243] sm:$0x3f]
    %v1092 = vld [vmem:[#allocation2 + $0x253] sm:$0x3f]
    %v1093 = vld [vmem:[#allocation2 + $0x263] sm:$0x3f]
    %v1094 = vld [vmem:[#allocation2 + $0x273] sm:$0x3f]
    %v1095 = vmul.f32 %v1055, 0.10936069
    %v1096 = vmul.f32 %v1056, 0.10936069
    %v1097 = vmul.f32 %v1057, 0.10936069
    %v1098 = vmul.f32 %v1058, 0.10936069
    %v1099 = vmul.f32 %v1059, 0.10936069
    %v1100 = vmul.f32 %v1060, 0.10936069
    %v1101 = vmul.f32 %v1061, 0.10936069
    %v1102 = vmul.f32 %v1062, 0.10936069
    %v1103 = vmul.f32 %v1063, 0.10936069
    %v1104 = vmul.f32 %v1064, 0.10936069
    %v1105 = vmul.f32 %v1065, 0.10936069
    %v1106 = vmul.f32 %v1066, 0.10936069
    %v1107 = vmul.f32 %v1067, 0.10936069
    %v1108 = vmul.f32 %v1068, 0.10936069
    %v1109 = vmul.f32 %v1069, 0.10936069
    %v1110 = vmul.f32 %v1070, 0.10936069
    %v1111 = vmul.f32 %v1071, 0.10936069
    %v1112 = vmul.f32 %v1072, 0.10936069
    %v1113 = vmul.f32 %v1073, 0.10936069
    %v1114 = vmul.f32 %v1074, 0.10936069
    %v1115 = vmul.f32 %v1075, 0.10936069
    %v1116 = vmul.f32 %v1076, 0.10936069
    %v1117 = vmul.f32 %v1077, 0.10936069
    %v1118 = vmul.f32 %v1078, 0.10936069
    %v1119 = vmul.f32 %v1079, 0.10936069
    %v1120 = vmul.f32 %v1080, 0.10936069
    %v1121 = vmul.f32 %v1081, 0.10936069
    %v1122 = vmul.f32 %v1082, 0.10936069
    %v1123 = vmul.f32 %v1083, 0.10936069
    %v1124 = vmul.f32 %v1084, 0.10936069
    %v1125 = vmul.f32 %v1085, 0.10936069
    %v1126 = vmul.f32 %v1086, 0.10936069
    %v1127 = vmul.f32 %v1087, 0.10936069
    %v1128 = vmul.f32 %v1088, 0.10936069
    %v1129 = vmul.f32 %v1089, 0.10936069
    %v1130 = vmul.f32 %v1090, 0.10936069
    %v1131 = vmul.f32 %v1091, 0.10936069
    %v1132 = vmul.f32 %v1092, 0.10936069
    %v1133 = vmul.f32 %v1093, 0.10936069
    %v1134 = vmul.f32 %v1094, 0.10936069
    %v1135 = vadd.f32 %v1015, %v1095
    %v1136 = vadd.f32 %v1016, %v1096
    %v1137 = vadd.f32 %v1017, %v1097
    %v1138 = vadd.f32 %v1018, %v1098
    %v1139 = vadd.f32 %v1019, %v1099
    %v1140 = vadd.f32 %v1020, %v1100
    %v1141 = vadd.f32 %v1021, %v1101
    %v1142 = vadd.f32 %v1022, %v1102
    %v1143 = vadd.f32 %v1023, %v1103
    %v1144 = vadd.f32 %v1024, %v1104
    %v1145 = vadd.f32 %v1025, %v1105
    %v1146 = vadd.f32 %v1026, %v1106
    %v1147 = vadd.f32 %v1027, %v1107
    %v1148 = vadd.f32 %v1028, %v1108
    %v1149 = vadd.f32 %v1029, %v1109
    %v1150 = vadd.f32 %v1030, %v1110
    %v1151 = vadd.f32 %v1031, %v1111
    %v1152 = vadd.f32 %v1032, %v1112
    %v1153 = vadd.f32 %v1033, %v1113
    %v1154 = vadd.f32 %v1034, %v1114
    %v1155 = vadd.f32 %v1035, %v1115
    %v1156 = vadd.f32 %v1036, %v1116
    %v1157 = vadd.f32 %v1037, %v1117
    %v1158 = vadd.f32 %v1038, %v1118
    %v1159 = vadd.f32 %v1039, %v1119
    %v1160 = vadd.f32 %v1040, %v1120
    %v1161 = vadd.f32 %v1041, %v1121
    %v1162 = vadd.f32 %v1042, %v1122
    %v1163 = vadd.f32 %v1043, %v1123
    %v1164 = vadd.f32 %v1044, %v1124
    %v1165 = vadd.f32 %v1045, %v1125
    %v1166 = vadd.f32 %v1046, %v1126
    %v1167 = vadd.f32 %v1047, %v1127
    %v1168 = vadd.f32 %v1048, %v1128
    %v1169 = vadd.f32 %v1049, %v1129
    %v1170 = vadd.f32 %v1050, %v1130
    %v1171 = vadd.f32 %v1051, %v1131
    %v1172 = vadd.f32 %v1052, %v1132
    %v1173 = vadd.f32 %v1053, %v1133
    %v1174 = vadd.f32 %v1054, %v1134
    %v1175 = vld [vmem:[#allocation2 + $0x4] sm:$0x3f]
    %v1176 = vld [vmem:[#allocation2 + $0x14] sm:$0x3f]
    %v1177 = vld [vmem:[#allocation2 + $0x24] sm:$0x3f]
    %v1178 = vld [vmem:[#allocation2 + $0x34] sm:$0x3f]
    %v1179 = vld [vmem:[#allocation2 + $0x44] sm:$0x3f]
    %v1180 = vld [vmem:[#allocation2 + $0x54] sm:$0x3f]
    %v1181 = vld [vmem:[#allocation2 + $0x64] sm:$0x3f]
    %v1182 = vld [vmem:[#allocation2 + $0x74] sm:$0x3f]
    %v1183 = vld [vmem:[#allocation2 + $0x84] sm:$0x3f]
    %v1184 = vld [vmem:[#allocation2 + $0x94] sm:$0x3f]
    %v1185 = vld [vmem:[#allocation2 + $0xa4] sm:$0x3f]
    %v1186 = vld [vmem:[#allocation2 + $0xb4] sm:$0x3f]
    %v1187 = vld [vmem:[#allocation2 + $0xc4] sm:$0x3f]
    %v1188 = vld [vmem:[#allocation2 + $0xd4] sm:$0x3f]
    %v1189 = vld [vmem:[#allocation2 + $0xe4] sm:$0x3f]
    %v1190 = vld [vmem:[#allocation2 + $0xf4] sm:$0x3f]
    %v1191 = vld [vmem:[#allocation2 + $0x104] sm:$0x3f]
    %v1192 = vld [vmem:[#allocation2 + $0x114] sm:$0x3f]
    %v1193 = vld [vmem:[#allocation2 + $0x124] sm:$0x3f]
    %v1194 = vld [vmem:[#allocation2 + $0x134] sm:$0x3f]
    %v1195 = vld [vmem:[#allocation2 + $0x144] sm:$0x3f]
    %v1196 = vld [vmem:[#allocation2 + $0x154] sm:$0x3f]
    %v1197 = vld [vmem:[#allocation2 + $0x164] sm:$0x3f]
    %v1198 = vld [vmem:[#allocation2 + $0x174] sm:$0x3f]
    %v1199 = vld [vmem:[#allocation2 + $0x184] sm:$0x3f]
    %v1200 = vld [vmem:[#allocation2 + $0x194] sm:$0x3f]
    %v1201 = vld [vmem:[#allocation2 + $0x1a4] sm:$0x3f]
    %v1202 = vld [vmem:[#allocation2 + $0x1b4] sm:$0x3f]
    %v1203 = vld [vmem:[#allocation2 + $0x1c4] sm:$0x3f]
    %v1204 = vld [vmem:[#allocation2 + $0x1d4] sm:$0x3f]
    %v1205 = vld [vmem:[#allocation2 + $0x1e4] sm:$0x3f]
    %v1206 = vld [vmem:[#allocation2 + $0x1f4] sm:$0x3f]
    %v1207 = vld [vmem:[#allocation2 + $0x204] sm:$0x3f]
    %v1208 = vld [vmem:[#allocation2 + $0x214] sm:$0x3f]
    %v1209 = vld [vmem:[#allocation2 + $0x224] sm:$0x3f]
    %v1210 = vld [vmem:[#allocation2 + $0x234] sm:$0x3f]
    %v1211 = vld [vmem:[#allocation2 + $0x244] sm:$0x3f]
    %v1212 = vld [vmem:[#allocation2 + $0x254] sm:$0x3f]
    %v1213 = vld [vmem:[#allocation2 + $0x264] sm:$0x3f]
    %v1214 = vld [vmem:[#allocation2 + $0x274] sm:$0x3f]
    %v1215 = vmul.f32 %v1175, 0.21300554
    %v1216 = vmul.f32 %v1176, 0.21300554
    %v1217 = vmul.f32 %v1177, 0.21300554
    %v1218 = vmul.f32 %v1178, 0.21300554
    %v1219 = vmul.f32 %v1179, 0.21300554
    %v1220 = vmul.f32 %v1180, 0.21300554
    %v1221 = vmul.f32 %v1181, 0.21300554
    %v1222 = vmul.f32 %v1182, 0.21300554
    %v1223 = vmul.f32 %v1183, 0.21300554
    %v1224 = vmul.f32 %v1184, 0.21300554
    %v1225 = vmul.f32 %v1185, 0.21300554
    %v1226 = vmul.f32 %v1186, 0.21300554
    %v1227 = vmul.f32 %v1187, 0.21300554
    %v1228 = vmul.f32 %v1188, 0.21300554
    %v1229 = vmul.f32 %v1189, 0.21300554
    %v1230 = vmul.f32 %v1190, 0.21300554
    %v1231 = vmul.f32 %v1191, 0.21300554
    %v1232 = vmul.f32 %v1192, 0.21300554
    %v1233 = vmul.f32 %v1193, 0.21300554
    %v1234 = vmul.f32 %v1194, 0.21300554
    %v1235 = vmul.f32 %v1195, 0.21300554
    %v1236 = vmul.f32 %v1196, 0.21300554
    %v1237 = vmul.f32 %v1197, 0.21300554
    %v1238 = vmul.f32 %v1198, 0.21300554
    %v1239 = vmul.f32 %v1199, 0.21300554
    %v1240 = vmul.f32 %v1200, 0.21300554
    %v1241 = vmul.f32 %v1201, 0.21300554
    %v1242 = vmul.f32 %v1202, 0.21300554
    %v1243 = vmul.f32 %v1203, 0.21300554
    %v1244 = vmul.f32 %v1204, 0.21300554
    %v1245 = vmul.f32 %v1205, 0.21300554
    %v1246 = vmul.f32 %v1206, 0.21300554
    %v1247 = vmul.f32 %v1207, 0.21300554
    %v1248 = vmul.f32 %v1208, 0.21300554
    %v1249 = vmul.f32 %v1209, 0.21300554
    %v1250 = vmul.f32 %v1210, 0.21300554
    %v1251 = vmul.f32 %v1211, 0.21300554
    %v1252 = vmul.f32 %v1212, 0.21300554
    %v1253 = vmul.f32 %v1213, 0.21300554
    %v1254 = vmul.f32 %v1214, 0.21300554
    %v1255 = vadd.f32 %v1135, %v1215
    %v1256 = vadd.f32 %v1136, %v1216
    %v1257 = vadd.f32 %v1137, %v1217
    %v1258 = vadd.f32 %v1138, %v1218
    %v1259 = vadd.f32 %v1139, %v1219
    %v1260 = vadd.f32 %v1140, %v1220
    %v1261 = vadd.f32 %v1141, %v1221
    %v1262 = vadd.f32 %v1142, %v1222
    %v1263 = vadd.f32 %v1143, %v1223
    %v1264 = vadd.f32 %v1144, %v1224
    %v1265 = vadd.f32 %v1145, %v1225
    %v1266 = vadd.f32 %v1146, %v1226
    %v1267 = vadd.f32 %v1147, %v1227
    %v1268 = vadd.f32 %v1148, %v1228
    %v1269 = vadd.f32 %v1149, %v1229
    %v1270 = vadd.f32 %v1150, %v1230
    %v1271 = vadd.f32 %v1151, %v1231
    %v1272 = vadd.f32 %v1152, %v1232
    %v1273 = vadd.f32 %v1153, %v1233
    %v1274 = vadd.f32 %v1154, %v1234
    %v1275 = vadd.f32 %v1155, %v1235
    %v1276 = vadd.f32 %v1156, %v1236
    %v1277 = vadd.f32 %v1157, %v1237
    %v1278 = vadd.f32 %v1158, %v1238
    %v1279 = vadd.f32 %v1159, %v1239
    %v1280 = vadd.f32 %v1160, %v1240
    %v1281 = vadd.f32 %v1161, %v1241
    %v1282 = vadd.f32 %v1162, %v1242
    %v1283 = vadd.f32 %v1163, %v1243
    %v1284 = vadd.f32 %v1164, %v1244
    %v1285 = vadd.f32 %v1165, %v1245
    %v1286 = vadd.f32 %v1166, %v1246
    %v1287 = vadd.f32 %v1167, %v1247
    %v1288 = vadd.f32 %v1168, %v1248
    %v1289 = vadd.f32 %v1169, %v1249
    %v1290 = vadd.f32 %v1170, %v1250
    %v1291 = vadd.f32 %v1171, %v1251
    %v1292 = vadd.f32 %v1172, %v1252
    %v1293 = vadd.f32 %v1173, %v1253
    %v1294 = vadd.f32 %v1174, %v1254
    %v1295 = vld [vmem:[#allocation2 + $0x5] sm:$0x3f]
    %v1296 = vld [vmem:[#allocation2 + $0x15] sm:$0x3f]
    %v1297 = vld [vmem:[#allocation2 + $0x25] sm:$0x3f]
    %v1298 = vld [vmem:[#allocation2 + $0x35] sm:$0x3f]
    %v1299 = vld [vmem:[#allocation2 + $0x45] sm:$0x3f]
    %v1300 = vld [vmem:[#allocation2 + $0x55] sm:$0x3f]
    %v1301 = vld [vmem:[#allocation2 + $0x65] sm:$0x3f]
    %v1302 = vld [vmem:[#allocation2 + $0x75] sm:$0x3f]
    %v1303 = vld [vmem:[#allocation2 + $0x85] sm:$0x3f]
    %v1304 = vld [vmem:[#allocation2 + $0x95] sm:$0x3f]
    %v1305 = vld [vmem:[#allocation2 + $0xa5] sm:$0x3f]
    %v1306 = vld [vmem:[#allocation2 + $0xb5] sm:$0x3f]
    %v1307 = vld [vmem:[#allocation2 + $0xc5] sm:$0x3f]
    %v1308 = vld [vmem:[#allocation2 + $0xd5] sm:$0x3f]
    %v1309 = vld [vmem:[#allocation2 + $0xe5] sm:$0x3f]
    %v1310 = vld [vmem:[#allocation2 + $0xf5] sm:$0x3f]
    %v1311 = vld [vmem:[#allocation2 + $0x105] sm:$0x3f]
    %v1312 = vld [vmem:[#allocation2 + $0x115] sm:$0x3f]
    %v1313 = vld [vmem:[#allocation2 + $0x125] sm:$0x3f]
    %v1314 = vld [vmem:[#allocation2 + $0x135] sm:$0x3f]
    %v1315 = vld [vmem:[#allocation2 + $0x145] sm:$0x3f]
    %v1316 = vld [vmem:[#allocation2 + $0x155] sm:$0x3f]
    %v1317 = vld [vmem:[#allocation2 + $0x165] sm:$0x3f]
    %v1318 = vld [vmem:[#allocation2 + $0x175] sm:$0x3f]
    %v1319 = vld [vmem:[#allocation2 + $0x185] sm:$0x3f]
    %v1320 = vld [vmem:[#allocation2 + $0x195] sm:$0x3f]
    %v1321 = vld [vmem:[#allocation2 + $0x1a5] sm:$0x3f]
    %v1322 = vld [vmem:[#allocation2 + $0x1b5] sm:$0x3f]
    %v1323 = vld [vmem:[#allocation2 + $0x1c5] sm:$0x3f]
    %v1324 = vld [vmem:[#allocation2 + $0x1d5] sm:$0x3f]
    %v1325 = vld [vmem:[#allocation2 + $0x1e5] sm:$0x3f]
    %v1326 = vld [vmem:[#allocation2 + $0x1f5] sm:$0x3f]
    %v1327 = vld [vmem:[#allocation2 + $0x205] sm:$0x3f]
    %v1328 = vld [vmem:[#allocation2 + $0x215] sm:$0x3f]
    %v1329 = vld [vmem:[#allocation2 + $0x225] sm:$0x3f]
    %v1330 = vld [vmem:[#allocation2 + $0x235] sm:$0x3f]
    %v1331 = vld [vmem:[#allocation2 + $0x245] sm:$0x3f]
    %v1332 = vld [vmem:[#allocation2 + $0x255] sm:$0x3f]
    %v1333 = vld [vmem:[#allocation2 + $0x265] sm:$0x3f]
    %v1334 = vld [vmem:[#allocation2 + $0x275] sm:$0x3f]
    %v1335 = vmul.f32 %v1295, 0.26601171
    %v1336 = vmul.f32 %v1296, 0.26601171
    %v1337 = vmul.f32 %v1297, 0.26601171
    %v1338 = vmul.f32 %v1298, 0.26601171
    %v1339 = vmul.f32 %v1299, 0.26601171
    %v1340 = vmul.f32 %v1300, 0.26601171
    %v1341 = vmul.f32 %v1301, 0.26601171
    %v1342 = vmul.f32 %v1302, 0.26601171
    %v1343 = vmul.f32 %v1303, 0.26601171
    %v1344 = vmul.f32 %v1304, 0.26601171
    %v1345 = vmul.f32 %v1305, 0.26601171
    %v1346 = vmul.f32 %v1306, 0.26601171
    %v1347 = vmul.f32 %v1307, 0.26601171
    %v1348 = vmul.f32 %v1308, 0.26601171
    %v1349 = vmul.f32 %v1309, 0.26601171
    %v1350 = vmul.f32 %v1310, 0.26601171
    %v1351 = vmul.f32 %v1311, 0.26601171
    %v1352 = vmul.f32 %v1312, 0.26601171
    %v1353 = vmul.f32 %v1313, 0.26601171
    %v1354 = vmul.f32 %v1314, 0.26601171
    %v1355 = vmul.f32 %v1315, 0.26601171
    %v1356 = vmul.f32 %v1316, 0.26601171
    %v1357 = vmul.f32 %v1317, 0.26601171
    %v1358 = vmul.f32 %v1318, 0.26601171
    %v1359 = vmul.f32 %v1319, 0.26601171
    %v1360 = vmul.f32 %v1320, 0.26601171
    %v1361 = vmul.f32 %v1321, 0.26601171
    %v1362 = vmul.f32 %v1322, 0.26601171
    %v1363 = vmul.f32 %v1323, 0.26601171
    %v1364 = vmul.f32 %v1324, 0.26601171
    %v1365 = vmul.f32 %v1325, 0.26601171
    %v1366 = vmul.f32 %v1326, 0.26601171
    %v1367 = vmul.f32 %v1327, 0.26601171
    %v1368 = vmul.f32 %v1328, 0.26601171
    %v1369 = vmul.f32 %v1329, 0.26601171
    %v1370 = vmul.f32 %v1330, 0.26601171
    %v1371 = vmul.f32 %v1331, 0.26601171
    %v1372 = vmul.f32 %v1332, 0.26601171
    %v1373 = vmul.f32 %v1333, 0.26601171
    %v1374 = vmul.f32 %v1334, 0.26601171
    %v1375 = vadd.f32 %v1255, %v1335
    %v1376 = vadd.f32 %v1256, %v1336
    %v1377 = vadd.f32 %v1257, %v1337
    %v1378 = vadd.f32 %v1258, %v1338
    %v1379 = vadd.f32 %v1259, %v1339
    %v1380 = vadd.f32 %v1260, %v1340
    %v1381 = vadd.f32 %v1261, %v1341
    %v1382 = vadd.f32 %v1262, %v1342
    %v1383 = vadd.f32 %v1263, %v1343
    %v1384 = vadd.f32 %v1264, %v1344
    %v1385 = vadd.f32 %v1265, %v1345
    %v1386 = vadd.f32 %v1266, %v1346
    %v1387 = vadd.f32 %v1267, %v1347
    %v1388 = vadd.f32 %v1268, %v1348
    %v1389 = vadd.f32 %v1269, %v1349
    %v1390 = vadd.f32 %v1270, %v1350
    %v1391 = vadd.f32 %v1271, %v1351
    %v1392 = vadd.f32 %v1272, %v1352
    %v1393 = vadd.f32 %v1273, %v1353
    %v1394 = vadd.f32 %v1274, %v1354
    %v1395 = vadd.f32 %v1275, %v1355
    %v1396 = vadd.f32 %v1276, %v1356
    %v1397 = vadd.f32 %v1277, %v1357
    %v1398 = vadd.f32 %v1278, %v1358
    %v1399 = vadd.f32 %v1279, %v1359
    %v1400 = vadd.f32 %v1280, %v1360
    %v1401 = vadd.f32 %v1281, %v1361
    %v1402 = vadd.f32 %v1282, %v1362
    %v1403 = vadd.f32 %v1283, %v1363
    %v1404 = vadd.f32 %v1284, %v1364
    %v1405 = vadd.f32 %v1285, %v1365
    %v1406 = vadd.f32 %v1286, %v1366
    %v1407 = vadd.f32 %v1287, %v1367
    %v1408 = vadd.f32 %v1288, %v1368
    %v1409 = vadd.f32 %v1289, %v1369
    %v1410 = vadd.f32 %v1290, %v1370
    %v1411 = vadd.f32 %v1291, %v1371
    %v1412 = vadd.f32 %v1292, %v1372
    %v1413 = vadd.f32 %v1293, %v1373
    %v1414 = vadd.f32 %v1294, %v1374
    %v1415 = vld [vmem:[#allocation2 + $0x6] sm:$0x3f]
    %v1416 = vld [vmem:[#allocation2 + $0x16] sm:$0x3f]
    %v1417 = vld [vmem:[#allocation2 + $0x26] sm:$0x3f]
    %v1418 = vld [vmem:[#allocation2 + $0x36] sm:$0x3f]
    %v1419 = vld [vmem:[#allocation2 + $0x46] sm:$0x3f]
    %v1420 = vld [vmem:[#allocation2 + $0x56] sm:$0x3f]
    %v1421 = vld [vmem:[#allocation2 + $0x66] sm:$0x3f]
    %v1422 = vld [vmem:[#allocation2 + $0x76] sm:$0x3f]
    %v1423 = vld [vmem:[#allocation2 + $0x86] sm:$0x3f]
    %v1424 = vld [vmem:[#allocation2 + $0x96] sm:$0x3f]
    %v1425 = vld [vmem:[#allocation2 + $0xa6] sm:$0x3f]
    %v1426 = vld [vmem:[#allocation2 + $0xb6] sm:$0x3f]
    %v1427 = vld [vmem:[#allocation2 + $0xc6] sm:$0x3f]
    %v1428 = vld [vmem:[#allocation2 + $0xd6] sm:$0x3f]
    %v1429 = vld [vmem:[#allocation2 + $0xe6] sm:$0x3f]
    %v1430 = vld [vmem:[#allocation2 + $0xf6] sm:$0x3f]
    %v1431 = vld [vmem:[#allocation2 + $0x106] sm:$0x3f]
    %v1432 = vld [vmem:[#allocation2 + $0x116] sm:$0x3f]
    %v1433 = vld [vmem:[#allocation2 + $0x126] sm:$0x3f]
    %v1434 = vld [vmem:[#allocation2 + $0x136] sm:$0x3f]
    %v1435 = vld [vmem:[#allocation2 + $0x146] sm:$0x3f]
    %v1436 = vld [vmem:[#allocation2 + $0x156] sm:$0x3f]
    %v1437 = vld [vmem:[#allocation2 + $0x166] sm:$0x3f]
    %v1438 = vld [vmem:[#allocation2 + $0x176] sm:$0x3f]
    %v1439 = vld [vmem:[#allocation2 + $0x186] sm:$0x3f]
    %v1440 = vld [vmem:[#allocation2 + $0x196] sm:$0x3f]
    %v1441 = vld [vmem:[#allocation2 + $0x1a6] sm:$0x3f]
    %v1442 = vld [vmem:[#allocation2 + $0x1b6] sm:$0x3f]
    %v1443 = vld [vmem:[#allocation2 + $0x1c6] sm:$0x3f]
    %v1444 = vld [vmem:[#allocation2 + $0x1d6] sm:$0x3f]
    %v1445 = vld [vmem:[#allocation2 + $0x1e6] sm:$0x3f]
    %v1446 = vld [vmem:[#allocation2 + $0x1f6] sm:$0x3f]
    %v1447 = vld [vmem:[#allocation2 + $0x206] sm:$0x3f]
    %v1448 = vld [vmem:[#allocation2 + $0x216] sm:$0x3f]
    %v1449 = vld [vmem:[#allocation2 + $0x226] sm:$0x3f]
    %v1450 = vld [vmem:[#allocation2 + $0x236] sm:$0x3f]
    %v1451 = vld [vmem:[#allocation2 + $0x246] sm:$0x3f]
    %v1452 = vld [vmem:[#allocation2 + $0x256] sm:$0x3f]
    %v1453 = vld [vmem:[#allocation2 + $0x266] sm:$0x3f]
    %v1454 = vld [vmem:[#allocation2 + $0x276] sm:$0x3f]
    %v1455 = vmul.f32 %v1415, 0.21300554
    %v1456 = vmul.f32 %v1416, 0.21300554
    %v1457 = vmul.f32 %v1417, 0.21300554
    %v1458 = vmul.f32 %v1418, 0.21300554
    %v1459 = vmul.f32 %v1419, 0.21300554
    %v1460 = vmul.f32 %v1420, 0.21300554
    %v1461 = vmul.f32 %v1421, 0.21300554
    %v1462 = vmul.f32 %v1422, 0.21300554
    %v1463 = vmul.f32 %v1423, 0.21300554
    %v1464 = vmul.f32 %v1424, 0.21300554
    %v1465 = vmul.f32 %v1425, 0.21300554
    %v1466 = vmul.f32 %v1426, 0.21300554
    %v1467 = vmul.f32 %v1427, 0.21300554
    %v1468 = vmul.f32 %v1428, 0.21300554
    %v1469 = vmul.f32 %v1429, 0.21300554
    %v1470 = vmul.f32 %v1430, 0.21300554
    %v1471 = vmul.f32 %v1431, 0.21300554
    %v1472 = vmul.f32 %v1432, 0.21300554
    %v1473 = vmul.f32 %v1433, 0.21300554
    %v1474 = vmul.f32 %v1434, 0.21300554
    %v1475 = vmul.f32 %v1435, 0.21300554
    %v1476 = vmul.f32 %v1436, 0.21300554
    %v1477 = vmul.f32 %v1437, 0.21300554
    %v1478 = vmul.f32 %v1438, 0.21300554
    %v1479 = vmul.f32 %v1439, 0.21300554
    %v1480 = vmul.f32 %v1440, 0.21300554
    %v1481 = vmul.f32 %v1441, 0.21300554
    %v1482 = vmul.f32 %v1442, 0.21300554
    %v1483 = vmul.f32 %v1443, 0.21300554
    %v1484 = vmul.f32 %v1444, 0.21300554
    %v1485 = vmul.f32 %v1445, 0.21300554
    %v1486 = vmul.f32 %v1446, 0.21300554
    %v1487 = vmul.f32 %v1447, 0.21300554
    %v1488 = vmul.f32 %v1448, 0.21300554
    %v1489 = vmul.f32 %v1449, 0.21300554
    %v1490 = vmul.f32 %v1450, 0.21300554
    %v1491 = vmul.f32 %v1451, 0.21300554
    %v1492 = vmul.f32 %v1452, 0.21300554
    %v1493 = vmul.f32 %v1453, 0.21300554
    %v1494 = vmul.f32 %v1454, 0.21300554
    %v1495 = vadd.f32 %v1375, %v1455
    %v1496 = vadd.f32 %v1376, %v1456
    %v1497 = vadd.f32 %v1377, %v1457
    %v1498 = vadd.f32 %v1378, %v1458
    %v1499 = vadd.f32 %v1379, %v1459
    %v1500 = vadd.f32 %v1380, %v1460
    %v1501 = vadd.f32 %v1381, %v1461
    %v1502 = vadd.f32 %v1382, %v1462
    %v1503 = vadd.f32 %v1383, %v1463
    %v1504 = vadd.f32 %v1384, %v1464
    %v1505 = vadd.f32 %v1385, %v1465
    %v1506 = vadd.f32 %v1386, %v1466
    %v1507 = vadd.f32 %v1387, %v1467
    %v1508 = vadd.f32 %v1388, %v1468
    %v1509 = vadd.f32 %v1389, %v1469
    %v1510 = vadd.f32 %v1390, %v1470
    %v1511 = vadd.f32 %v1391, %v1471
    %v1512 = vadd.f32 %v1392, %v1472
    %v1513 = vadd.f32 %v1393, %v1473
    %v1514 = vadd.f32 %v1394, %v1474
    %v1515 = vadd.f32 %v1395, %v1475
    %v1516 = vadd.f32 %v1396, %v1476
    %v1517 = vadd.f32 %v1397, %v1477
    %v1518 = vadd.f32 %v1398, %v1478
    %v1519 = vadd.f32 %v1399, %v1479
    %v1520 = vadd.f32 %v1400, %v1480
    %v1521 = vadd.f32 %v1401, %v1481
    %v1522 = vadd.f32 %v1402, %v1482
    %v1523 = vadd.f32 %v1403, %v1483
    %v1524 = vadd.f32 %v1404, %v1484
    %v1525 = vadd.f32 %v1405, %v1485
    %v1526 = vadd.f32 %v1406, %v1486
    %v1527 = vadd.f32 %v1407, %v1487
    %v1528 = vadd.f32 %v1408, %v1488
    %v1529 = vadd.f32 %v1409, %v1489
    %v1530 = vadd.f32 %v1410, %v1490
    %v1531 = vadd.f32 %v1411, %v1491
    %v1532 = vadd.f32 %v1412, %v1492
    %v1533 = vadd.f32 %v1413, %v1493
    %v1534 = vadd.f32 %v1414, %v1494
    %v1535 = vld [vmem:[#allocation2 + $0x7] sm:$0x3f]
    %v1536 = vld [vmem:[#allocation2 + $0x17] sm:$0x3f]
    %v1537 = vld [vmem:[#allocation2 + $0x27] sm:$0x3f]
    %v1538 = vld [vmem:[#allocation2 + $0x37] sm:$0x3f]
    %v1539 = vld [vmem:[#allocation2 + $0x47] sm:$0x3f]
    %v1540 = vld [vmem:[#allocation2 + $0x57] sm:$0x3f]
    %v1541 = vld [vmem:[#allocation2 + $0x67] sm:$0x3f]
    %v1542 = vld [vmem:[#allocation2 + $0x77] sm:$0x3f]
    %v1543 = vld [vmem:[#allocation2 + $0x87] sm:$0x3f]
    %v1544 = vld [vmem:[#allocation2 + $0x97] sm:$0x3f]
    %v1545 = vld [vmem:[#allocation2 + $0xa7] sm:$0x3f]
    %v1546 = vld [vmem:[#allocation2 + $0xb7] sm:$0x3f]
    %v1547 = vld [vmem:[#allocation2 + $0xc7] sm:$0x3f]
    %v1548 = vld [vmem:[#allocation2 + $0xd7] sm:$0x3f]
    %v1549 = vld [vmem:[#allocation2 + $0xe7] sm:$0x3f]
    %v1550 = vld [vmem:[#allocation2 + $0xf7] sm:$0x3f]
    %v1551 = vld [vmem:[#allocation2 + $0x107] sm:$0x3f]
    %v1552 = vld [vmem:[#allocation2 + $0x117] sm:$0x3f]
    %v1553 = vld [vmem:[#allocation2 + $0x127] sm:$0x3f]
    %v1554 = vld [vmem:[#allocation2 + $0x137] sm:$0x3f]
    %v1555 = vld [vmem:[#allocation2 + $0x147] sm:$0x3f]
    %v1556 = vld [vmem:[#allocation2 + $0x157] sm:$0x3f]
    %v1557 = vld [vmem:[#allocation2 + $0x167] sm:$0x3f]
    %v1558 = vld [vmem:[#allocation2 + $0x177] sm:$0x3f]
    %v1559 = vld [vmem:[#allocation2 + $0x187] sm:$0x3f]
    %v1560 = vld [vmem:[#allocation2 + $0x197] sm:$0x3f]
    %v1561 = vld [vmem:[#allocation2 + $0x1a7] sm:$0x3f]
    %v1562 = vld [vmem:[#allocation2 + $0x1b7] sm:$0x3f]
    %v1563 = vld [vmem:[#allocation2 + $0x1c7] sm:$0x3f]
    %v1564 = vld [vmem:[#allocation2 + $0x1d7] sm:$0x3f]
    %v1565 = vld [vmem:[#allocation2 + $0x1e7] sm:$0x3f]
    %v1566 = vld [vmem:[#allocation2 + $0x1f7] sm:$0x3f]
    %v1567 = vld [vmem:[#allocation2 + $0x207] sm:$0x3f]
    %v1568 = vld [vmem:[#allocation2 + $0x217] sm:$0x3f]
    %v1569 = vld [vmem:[#allocation2 + $0x227] sm:$0x3f]
    %v1570 = vld [vmem:[#allocation2 + $0x237] sm:$0x3f]
    %v1571 = vld [vmem:[#allocation2 + $0x247] sm:$0x3f]
    %v1572 = vld [vmem:[#allocation2 + $0x257] sm:$0x3f]
    %v1573 = vld [vmem:[#allocation2 + $0x267] sm:$0x3f]
    %v1574 = vld [vmem:[#allocation2 + $0x277] sm:$0x3f]
    %v1575 = vmul.f32 %v1535, 0.10936069
    %v1576 = vmul.f32 %v1536, 0.10936069
    %v1577 = vmul.f32 %v1537, 0.10936069
    %v1578 = vmul.f32 %v1538, 0.10936069
    %v1579 = vmul.f32 %v1539, 0.10936069
    %v1580 = vmul.f32 %v1540, 0.10936069
    %v1581 = vmul.f32 %v1541, 0.10936069
    %v1582 = vmul.f32 %v1542, 0.10936069
    %v1583 = vmul.f32 %v1543, 0.10936069
    %v1584 = vmul.f32 %v1544, 0.10936069
    %v1585 = vmul.f32 %v1545, 0.10936069
    %v1586 = vmul.f32 %v1546, 0.10936069
    %v1587 = vmul.f32 %v1547, 0.10936069
    %v1588 = vmul.f32 %v1548, 0.10936069
    %v1589 = vmul.f32 %v1549, 0.10936069
    %v1590 = vmul.f32 %v1550, 0.10936069
    %v1591 = vmul.f32 %v1551, 0.10936069
    %v1592 = vmul.f32 %v1552, 0.10936069
    %v1593 = vmul.f32 %v1553, 0.10936069
    %v1594 = vmul.f32 %v1554, 0.10936069
    %v1595 = vmul.f32 %v1555, 0.10936069
    %v1596 = vmul.f32 %v1556, 0.10936069
    %v1597 = vmul.f32 %v1557, 0.10936069
    %v1598 = vmul.f32 %v1558, 0.10936069
    %v1599 = vmul.f32 %v1559, 0.10936069
    %v1600 = vmul.f32 %v1560, 0.10936069
    %v1601 = vmul.f32 %v1561, 0.10936069
    %v1602 = vmul.f32 %v1562, 0.10936069
    %v1603 = vmul.f32 %v1563, 0.10936069
    %v1604 = vmul.f32 %v1564, 0.10936069
    %v1605 = vmul.f32 %v1565, 0.10936069
    %v1606 = vmul.f32 %v1566, 0.10936069
    %v1607 = vmul.f32 %v1567, 0.10936069
    %v1608 = vmul.f32 %v1568, 0.10936069
    %v1609 = vmul.f32 %v1569, 0.10936069
    %v1610 = vmul.f32 %v1570, 0.10936069
    %v1611 = vmul.f32 %v1571, 0.10936069
    %v1612 = vmul.f32 %v1572, 0.10936069
    %v1613 = vmul.f32 %v1573, 0.10936069
    %v1614 = vmul.f32 %v1574, 0.10936069
    %v1615 = vadd.f32 %v1495, %v1575
    %v1616 = vadd.f32 %v1496, %v1576
    %v1617 = vadd.f32 %v1497, %v1577
    %v1618 = vadd.f32 %v1498, %v1578
    %v1619 = vadd.f32 %v1499, %v1579
    %v1620 = vadd.f32 %v1500, %v1580
    %v1621 = vadd.f32 %v1501, %v1581
    %v1622 = vadd.f32 %v1502, %v1582
    %v1623 = vadd.f32 %v1503, %v1583
    %v1624 = vadd.f32 %v1504, %v1584
    %v1625 = vadd.f32 %v1505, %v1585
    %v1626 = vadd.f32 %v1506, %v1586
    %v1627 = vadd.f32 %v1507, %v1587
    %v1628 = vadd.f32 %v1508, %v1588
    %v1629 = vadd.f32 %v1509, %v1589
    %v1630 = vadd.f32 %v1510, %v1590
    %v1631 = vadd.f32 %v1511, %v1591
    %v1632 = vadd.f32 %v1512, %v1592
    %v1633 = vadd.f32 %v1513, %v1593
    %v1634 = vadd.f32 %v1514, %v1594
    %v1635 = vadd.f32 %v1515, %v1595
    %v1636 = vadd.f32 %v1516, %v1596
    %v1637 = vadd.f32 %v1517, %v1597
    %v1638 = vadd.f32 %v1518, %v1598
    %v1639 = vadd.f32 %v1519, %v1599
    %v1640 = vadd.f32 %v1520, %v1600
    %v1641 = vadd.f32 %v1521, %v1601
    %v1642 = vadd.f32 %v1522, %v1602
    %v1643 = vadd.f32 %v1523, %v1603
    %v1644 = vadd.f32 %v1524, %v1604
    %v1645 = vadd.f32 %v1525, %v1605
    %v1646 = vadd.f32 %v1526, %v1606
    %v1647 = vadd.f32 %v1527, %v1607
    %v1648 = vadd.f32 %v1528, %v1608
    %v1649 = vadd.f32 %v1529, %v1609
    %v1650 = vadd.f32 %v1530, %v1610
    %v1651 = vadd.f32 %v1531, %v1611
    %v1652 = vadd.f32 %v1532, %v1612
    %v1653 = vadd.f32 %v1533, %v1613
    %v1654 = vadd.f32 %v1534, %v1614
    %v1655 = vld [vmem:[#allocation2 + $0x8] sm:$0x3f]
    %v1656 = vld [vmem:[#allocation2 + $0x18] sm:$0x3f]
    %v1657 = vld [vmem:[#allocation2 + $0x28] sm:$0x3f]
    %v1658 = vld [vmem:[#allocation2 + $0x38] sm:$0x3f]
    %v1659 = vld [vmem:[#allocation2 + $0x48] sm:$0x3f]
    %v1660 = vld [vmem:[#allocation2 + $0x58] sm:$0x3f]
    %v1661 = vld [vmem:[#allocation2 + $0x68] sm:$0x3f]
    %v1662 = vld [vmem:[#allocation2 + $0x78] sm:$0x3f]
    %v1663 = vld [vmem:[#allocation2 + $0x88] sm:$0x3f]
    %v1664 = vld [vmem:[#allocation2 + $0x98] sm:$0x3f]
    %v1665 = vld [vmem:[#allocation2 + $0xa8] sm:$0x3f]
    %v1666 = vld [vmem:[#allocation2 + $0xb8] sm:$0x3f]
    %v1667 = vld [vmem:[#allocation2 + $0xc8] sm:$0x3f]
    %v1668 = vld [vmem:[#allocation2 + $0xd8] sm:$0x3f]
    %v1669 = vld [vmem:[#allocation2 + $0xe8] sm:$0x3f]
    %v1670 = vld [vmem:[#allocation2 + $0xf8] sm:$0x3f]
    %v1671 = vld [vmem:[#allocation2 + $0x108] sm:$0x3f]
    %v1672 = vld [vmem:[#allocation2 + $0x118] sm:$0x3f]
    %v1673 = vld [vmem:[#allocation2 + $0x128] sm:$0x3f]
    %v1674 = vld [vmem:[#allocation2 + $0x138] sm:$0x3f]
    %v1675 = vld [vmem:[#allocation2 + $0x148] sm:$0x3f]
    %v1676 = vld [vmem:[#allocation2 + $0x158] sm:$0x3f]
    %v1677 = vld [vmem:[#allocation2 + $0x168] sm:$0x3f]
    %v1678 = vld [vmem:[#allocation2 + $0x178] sm:$0x3f]
    %v1679 = vld [vmem:[#allocation2 + $0x188] sm:$0x3f]
    %v1680 = vld [vmem:[#allocation2 + $0x198] sm:$0x3f]
    %v1681 = vld [vmem:[#allocation2 + $0x1a8] sm:$0x3f]
    %v1682 = vld [vmem:[#allocation2 + $0x1b8] sm:$0x3f]
    %v1683 = vld [vmem:[#allocation2 + $0x1c8] sm:$0x3f]
    %v1684 = vld [vmem:[#allocation2 + $0x1d8] sm:$0x3f]
    %v1685 = vld [vmem:[#allocation2 + $0x1e8] sm:$0x3f]
    %v1686 = vld [vmem:[#allocation2 + $0x1f8] sm:$0x3f]
    %v1687 = vld [vmem:[#allocation2 + $0x208] sm:$0x3f]
    %v1688 = vld [vmem:[#allocation2 + $0x218] sm:$0x3f]
    %v1689 = vld [vmem:[#allocation2 + $0x228] sm:$0x3f]
    %v1690 = vld [vmem:[#allocation2 + $0x238] sm:$0x3f]
    %v1691 = vld [vmem:[#allocation2 + $0x248] sm:$0x3f]
    %v1692 = vld [vmem:[#allocation2 + $0x258] sm:$0x3f]
    %v1693 = vld [vmem:[#allocation2 + $0x268] sm:$0x3f]
    %v1694 = vld [vmem:[#allocation2 + $0x278] sm:$0x3f]
    %v1695 = vmul.f32 %v1655, 0.036000773
    %v1696 = vmul.f32 %v1656, 0.036000773
    %v1697 = vmul.f32 %v1657, 0.036000773
    %v1698 = vmul.f32 %v1658, 0.036000773
    %v1699 = vmul.f32 %v1659, 0.036000773
    %v1700 = vmul.f32 %v1660, 0.036000773
    %v1701 = vmul.f32 %v1661, 0.036000773
    %v1702 = vmul.f32 %v1662, 0.036000773
    %v1703 = vmul.f32 %v1663, 0.036000773
    %v1704 = vmul.f32 %v1664, 0.036000773
    %v1705 = vmul.f32 %v1665, 0.036000773
    %v1706 = vmul.f32 %v1666, 0.036000773
    %v1707 = vmul.f32 %v1667, 0.036000773
    %v1708 = vmul.f32 %v1668, 0.036000773
    %v1709 = vmul.f32 %v1669, 0.036000773
    %v1710 = vmul.f32 %v1670, 0.036000773
    %v1711 = vmul.f32 %v1671, 0.036000773
    %v1712 = vmul.f32 %v1672, 0.036000773
    %v1713 = vmul.f32 %v1673, 0.036000773
    %v1714 = vmul.f32 %v1674, 0.036000773
    %v1715 = vmul.f32 %v1675, 0.036000773
    %v1716 = vmul.f32 %v1676, 0.036000773
    %v1717 = vmul.f32 %v1677, 0.036000773
    %v1718 = vmul.f32 %v1678, 0.036000773
    %v1719 = vmul.f32 %v1679, 0.036000773
    %v1720 = vmul.f32 %v1680, 0.036000773
    %v1721 = vmul.f32 %v1681, 0.036000773
    %v1722 = vmul.f32 %v1682, 0.036000773
    %v1723 = vmul.f32 %v1683, 0.036000773
    %v1724 = vmul.f32 %v1684, 0.036000773
    %v1725 = vmul.f32 %v1685, 0.036000773
    %v1726 = vmul.f32 %v1686, 0.036000773
    %v1727 = vmul.f32 %v1687, 0.036000773
    %v1728 = vmul.f32 %v1688, 0.036000773
    %v1729 = vmul.f32 %v1689, 0.036000773
    %v1730 = vmul.f32 %v1690, 0.036000773
    %v1731 = vmul.f32 %v1691, 0.036000773
    %v1732 = vmul.f32 %v1692, 0.036000773
    %v1733 = vmul.f32 %v1693, 0.036000773
    %v1734 = vmul.f32 %v1694, 0.036000773
    %v1735 = vadd.f32 %v1615, %v1695
    %v1736 = vadd.f32 %v1616, %v1696
    %v1737 = vadd.f32 %v1617, %v1697
    %v1738 = vadd.f32 %v1618, %v1698
    %v1739 = vadd.f32 %v1619, %v1699
    %v1740 = vadd.f32 %v1620, %v1700
    %v1741 = vadd.f32 %v1621, %v1701
    %v1742 = vadd.f32 %v1622, %v1702
    %v1743 = vadd.f32 %v1623, %v1703
    %v1744 = vadd.f32 %v1624, %v1704
    %v1745 = vadd.f32 %v1625, %v1705
    %v1746 = vadd.f32 %v1626, %v1706
    %v1747 = vadd.f32 %v1627, %v1707
    %v1748 = vadd.f32 %v1628, %v1708
    %v1749 = vadd.f32 %v1629, %v1709
    %v1750 = vadd.f32 %v1630, %v1710
    %v1751 = vadd.f32 %v1631, %v1711
    %v1752 = vadd.f32 %v1632, %v1712
    %v1753 = vadd.f32 %v1633, %v1713
    %v1754 = vadd.f32 %v1634, %v1714
    %v1755 = vadd.f32 %v1635, %v1715
    %v1756 = vadd.f32 %v1636, %v1716
    %v1757 = vadd.f32 %v1637, %v1717
    %v1758 = vadd.f32 %v1638, %v1718
    %v1759 = vadd.f32 %v1639, %v1719
    %v1760 = vadd.f32 %v1640, %v1720
    %v1761 = vadd.f32 %v1641, %v1721
    %v1762 = vadd.f32 %v1642, %v1722
    %v1763 = vadd.f32 %v1643, %v1723
    %v1764 = vadd.f32 %v1644, %v1724
    %v1765 = vadd.f32 %v1645, %v1725
    %v1766 = vadd.f32 %v1646, %v1726
    %v1767 = vadd.f32 %v1647, %v1727
    %v1768 = vadd.f32 %v1648, %v1728
    %v1769 = vadd.f32 %v1649, %v1729
    %v1770 = vadd.f32 %v1650, %v1730
    %v1771 = vadd.f32 %v1651, %v1731
    %v1772 = vadd.f32 %v1652, %v1732
    %v1773 = vadd.f32 %v1653, %v1733
    %v1774 = vadd.f32 %v1654, %v1734
    %v1775 = vld [vmem:[#allocation2 + $0x9] sm:$0x3f]
    %v1776 = vld [vmem:[#allocation2 + $0x19] sm:$0x3f]
    %v1777 = vld [vmem:[#allocation2 + $0x29] sm:$0x3f]
    %v1778 = vld [vmem:[#allocation2 + $0x39] sm:$0x3f]
    %v1779 = vld [vmem:[#allocation2 + $0x49] sm:$0x3f]
    %v1780 = vld [vmem:[#allocation2 + $0x59] sm:$0x3f]
    %v1781 = vld [vmem:[#allocation2 + $0x69] sm:$0x3f]
    %v1782 = vld [vmem:[#allocation2 + $0x79] sm:$0x3f]
    %v1783 = vld [vmem:[#allocation2 + $0x89] sm:$0x3f]
    %v1784 = vld [vmem:[#allocation2 + $0x99] sm:$0x3f]
    %v1785 = vld [vmem:[#allocation2 + $0xa9] sm:$0x3f]
    %v1786 = vld [vmem:[#allocation2 + $0xb9] sm:$0x3f]
    %v1787 = vld [vmem:[#allocation2 + $0xc9] sm:$0x3f]
    %v1788 = vld [vmem:[#allocation2 + $0xd9] sm:$0x3f]
    %v1789 = vld [vmem:[#allocation2 + $0xe9] sm:$0x3f]
    %v1790 = vld [vmem:[#allocation2 + $0xf9] sm:$0x3f]
    %v1791 = vld [vmem:[#allocation2 + $0x109] sm:$0x3f]
    %v1792 = vld [vmem:[#allocation2 + $0x119] sm:$0x3f]
    %v1793 = vld [vmem:[#allocation2 + $0x129] sm:$0x3f]
    %v1794 = vld [vmem:[#allocation2 + $0x139] sm:$0x3f]
    %v1795 = vld [vmem:[#allocation2 + $0x149] sm:$0x3f]
    %v1796 = vld [vmem:[#allocation2 + $0x159] sm:$0x3f]
    %v1797 = vld [vmem:[#allocation2 + $0x169] sm:$0x3f]
    %v1798 = vld [vmem:[#allocation2 + $0x179] sm:$0x3f]
    %v1799 = vld [vmem:[#allocation2 + $0x189] sm:$0x3f]
    %v1800 = vld [vmem:[#allocation2 + $0x199] sm:$0x3f]
    %v1801 = vld [vmem:[#allocation2 + $0x1a9] sm:$0x3f]
    %v1802 = vld [vmem:[#allocation2 + $0x1b9] sm:$0x3f]
    %v1803 = vld [vmem:[#allocation2 + $0x1c9] sm:$0x3f]
    %v1804 = vld [vmem:[#allocation2 + $0x1d9] sm:$0x3f]
    %v1805 = vld [vmem:[#allocation2 + $0x1e9] sm:$0x3f]
    %v1806 = vld [vmem:[#allocation2 + $0x1f9] sm:$0x3f]
    %v1807 = vld [vmem:[#allocation2 + $0x209] sm:$0x3f]
    %v1808 = vld [vmem:[#allocation2 + $0x219] sm:$0x3f]
    %v1809 = vld [vmem:[#allocation2 + $0x229] sm:$0x3f]
    %v1810 = vld [vmem:[#allocation2 + $0x239] sm:$0x3f]
    %v1811 = vld [vmem:[#allocation2 + $0x249] sm:$0x3f]
    %v1812 = vld [vmem:[#allocation2 + $0x259] sm:$0x3f]
    %v1813 = vld [vmem:[#allocation2 + $0x269] sm:$0x3f]
    %v1814 = vld [vmem:[#allocation2 + $0x279] sm:$0x3f]
    %v1815 = vmul.f32 %v1775, 0.007598758
    %v1816 = vmul.f32 %v1776, 0.007598758
    %v1817 = vmul.f32 %v1777, 0.007598758
    %v1818 = vmul.f32 %v1778, 0.007598758
    %v1819 = vmul.f32 %v1779, 0.007598758
    %v1820 = vmul.f32 %v1780, 0.007598758
    %v1821 = vmul.f32 %v1781, 0.007598758
    %v1822 = vmul.f32 %v1782, 0.007598758
    %v1823 = vmul.f32 %v1783, 0.007598758
    %v1824 = vmul.f32 %v1784, 0.007598758
    %v1825 = vmul.f32 %v1785, 0.007598758
    %v1826 = vmul.f32 %v1786, 0.007598758
    %v1827 = vmul.f32 %v1787, 0.007598758
    %v1828 = vmul.f32 %v1788, 0.007598758
    %v1829 = vmul.f32 %v1789, 0.007598758
    %v1830 = vmul.f32 %v1790, 0.007598758
    %v1831 = vmul.f32 %v1791, 0.007598758
    %v1832 = vmul.f32 %v1792, 0.007598758
    %v1833 = vmul.f32 %v1793, 0.007598758
    %v1834 = vmul.f32 %v1794, 0.007598758
    %v1835 = vmul.f32 %v1795, 0.007598758
    %v1836 = vmul.f32 %v1796, 0.007598758
    %v1837 = vmul.f32 %v1797, 0.007598758
    %v1838 = vmul.f32 %v1798, 0.007598758
    %v1839 = vmul.f32 %v1799, 0.007598758
    %v1840 = vmul.f32 %v1800, 0.007598758
    %v1841 = vmul.f32 %v1801, 0.007598758
    %v1842 = vmul.f32 %v1802, 0.007598758
    %v1843 = vmul.f32 %v1803, 0.007598758
    %v1844 = vmul.f32 %v1804, 0.007598758
    %v1845 = vmul.f32 %v1805, 0.007598758
    %v1846 = vmul.f32 %v1806, 0.007598758
    %v1847 = vmul.f32 %v1807, 0.007598758
    %v1848 = vmul.f32 %v1808, 0.007598758
    %v1849 = vmul.f32 %v1809, 0.007598758
    %v1850 = vmul.f32 %v1810, 0.007598758
    %v1851 = vmul.f32 %v1811, 0.007598758
    %v1852 = vmul.f32 %v1812, 0.007598758
    %v1853 = vmul.f32 %v1813, 0.007598758
    %v1854 = vmul.f32 %v1814, 0.007598758
    %v1855 = vadd.f32 %v1735, %v1815
    %v1856 = vadd.f32 %v1736, %v1816
    %v1857 = vadd.f32 %v1737, %v1817
    %v1858 = vadd.f32 %v1738, %v1818
    %v1859 = vadd.f32 %v1739, %v1819
    %v1860 = vadd.f32 %v1740, %v1820
    %v1861 = vadd.f32 %v1741, %v1821
    %v1862 = vadd.f32 %v1742, %v1822
    %v1863 = vadd.f32 %v1743, %v1823
    %v1864 = vadd.f32 %v1744, %v1824
    %v1865 = vadd.f32 %v1745, %v1825
    %v1866 = vadd.f32 %v1746, %v1826
    %v1867 = vadd.f32 %v1747, %v1827
    %v1868 = vadd.f32 %v1748, %v1828
    %v1869 = vadd.f32 %v1749, %v1829
    %v1870 = vadd.f32 %v1750, %v1830
    %v1871 = vadd.f32 %v1751, %v1831
    %v1872 = vadd.f32 %v1752, %v1832
    %v1873 = vadd.f32 %v1753, %v1833
    %v1874 = vadd.f32 %v1754, %v1834
    %v1875 = vadd.f32 %v1755, %v1835
    %v1876 = vadd.f32 %v1756, %v1836
    %v1877 = vadd.f32 %v1757, %v1837
    %v1878 = vadd.f32 %v1758, %v1838
    %v1879 = vadd.f32 %v1759, %v1839
    %v1880 = vadd.f32 %v1760, %v1840
    %v1881 = vadd.f32 %v1761, %v1841
    %v1882 = vadd.f32 %v1762, %v1842
    %v1883 = vadd.f32 %v1763, %v1843
    %v1884 = vadd.f32 %v1764, %v1844
    %v1885 = vadd.f32 %v1765, %v1845
    %v1886 = vadd.f32 %v1766, %v1846
    %v1887 = vadd.f32 %v1767, %v1847
    %v1888 = vadd.f32 %v1768, %v1848
    %v1889 = vadd.f32 %v1769, %v1849
    %v1890 = vadd.f32 %v1770, %v1850
    %v1891 = vadd.f32 %v1771, %v1851
    %v1892 = vadd.f32 %v1772, %v1852
    %v1893 = vadd.f32 %v1773, %v1853
    %v1894 = vadd.f32 %v1774, %v1854
    %v1895 = vld [vmem:[#allocation2 + $0xa] sm:$0x3f]
    %v1896 = vld [vmem:[#allocation2 + $0x1a] sm:$0x3f]
    %v1897 = vld [vmem:[#allocation2 + $0x2a] sm:$0x3f]
    %v1898 = vld [vmem:[#allocation2 + $0x3a] sm:$0x3f]
    %v1899 = vld [vmem:[#allocation2 + $0x4a] sm:$0x3f]
    %v1900 = vld [vmem:[#allocation2 + $0x5a] sm:$0x3f]
    %v1901 = vld [vmem:[#allocation2 + $0x6a] sm:$0x3f]
    %v1902 = vld [vmem:[#allocation2 + $0x7a] sm:$0x3f]
    %v1903 = vld [vmem:[#allocation2 + $0x8a] sm:$0x3f]
    %v1904 = vld [vmem:[#allocation2 + $0x9a] sm:$0x3f]
    %v1905 = vld [vmem:[#allocation2 + $0xaa] sm:$0x3f]
    %v1906 = vld [vmem:[#allocation2 + $0xba] sm:$0x3f]
    %v1907 = vld [vmem:[#allocation2 + $0xca] sm:$0x3f]
    %v1908 = vld [vmem:[#allocation2 + $0xda] sm:$0x3f]
    %v1909 = vld [vmem:[#allocation2 + $0xea] sm:$0x3f]
    %v1910 = vld [vmem:[#allocation2 + $0xfa] sm:$0x3f]
    %v1911 = vld [vmem:[#allocation2 + $0x10a] sm:$0x3f]
    %v1912 = vld [vmem:[#allocation2 + $0x11a] sm:$0x3f]
    %v1913 = vld [vmem:[#allocation2 + $0x12a] sm:$0x3f]
    %v1914 = vld [vmem:[#allocation2 + $0x13a] sm:$0x3f]
    %v1915 = vld [vmem:[#allocation2 + $0x14a] sm:$0x3f]
    %v1916 = vld [vmem:[#allocation2 + $0x15a] sm:$0x3f]
    %v1917 = vld [vmem:[#allocation2 + $0x16a] sm:$0x3f]
    %v1918 = vld [vmem:[#allocation2 + $0x17a] sm:$0x3f]
    %v1919 = vld [vmem:[#allocation2 + $0x18a] sm:$0x3f]
    %v1920 = vld [vmem:[#allocation2 + $0x19a] sm:$0x3f]
    %v1921 = vld [vmem:[#allocation2 + $0x1aa] sm:$0x3f]
    %v1922 = vld [vmem:[#allocation2 + $0x1ba] sm:$0x3f]
    %v1923 = vld [vmem:[#allocation2 + $0x1ca] sm:$0x3f]
    %v1924 = vld [vmem:[#allocation2 + $0x1da] sm:$0x3f]
    %v1925 = vld [vmem:[#allocation2 + $0x1ea] sm:$0x3f]
    %v1926 = vld [vmem:[#allocation2 + $0x1fa] sm:$0x3f]
    %v1927 = vld [vmem:[#allocation2 + $0x20a] sm:$0x3f]
    %v1928 = vld [vmem:[#allocation2 + $0x21a] sm:$0x3f]
    %v1929 = vld [vmem:[#allocation2 + $0x22a] sm:$0x3f]
    %v1930 = vld [vmem:[#allocation2 + $0x23a] sm:$0x3f]
    %v1931 = vld [vmem:[#allocation2 + $0x24a] sm:$0x3f]
    %v1932 = vld [vmem:[#allocation2 + $0x25a] sm:$0x3f]
    %v1933 = vld [vmem:[#allocation2 + $0x26a] sm:$0x3f]
    %v1934 = vld [vmem:[#allocation2 + $0x27a] sm:$0x3f]
    %v1935 = vmul.f32 %v1895, 0.0010283801
    %v1936 = vmul.f32 %v1896, 0.0010283801
    %v1937 = vmul.f32 %v1897, 0.0010283801
    %v1938 = vmul.f32 %v1898, 0.0010283801
    %v1939 = vmul.f32 %v1899, 0.0010283801
    %v1940 = vmul.f32 %v1900, 0.0010283801
    %v1941 = vmul.f32 %v1901, 0.0010283801
    %v1942 = vmul.f32 %v1902, 0.0010283801
    %v1943 = vmul.f32 %v1903, 0.0010283801
    %v1944 = vmul.f32 %v1904, 0.0010283801
    %v1945 = vmul.f32 %v1905, 0.0010283801
    %v1946 = vmul.f32 %v1906, 0.0010283801
    %v1947 = vmul.f32 %v1907, 0.0010283801
    %v1948 = vmul.f32 %v1908, 0.0010283801
    %v1949 = vmul.f32 %v1909, 0.0010283801
    %v1950 = vmul.f32 %v1910, 0.0010283801
    %v1951 = vmul.f32 %v1911, 0.0010283801
    %v1952 = vmul.f32 %v1912, 0.0010283801
    %v1953 = vmul.f32 %v1913, 0.0010283801
    %v1954 = vmul.f32 %v1914, 0.0010283801
    %v1955 = vmul.f32 %v1915, 0.0010283801
    %v1956 = vmul.f32 %v1916, 0.0010283801
    %v1957 = vmul.f32 %v1917, 0.0010283801
    %v1958 = vmul.f32 %v1918, 0.0010283801
    %v1959 = vmul.f32 %v1919, 0.0010283801
    %v1960 = vmul.f32 %v1920, 0.0010283801
    %v1961 = vmul.f32 %v1921, 0.0010283801
    %v1962 = vmul.f32 %v1922, 0.0010283801
    %v1963 = vmul.f32 %v1923, 0.0010283801
    %v1964 = vmul.f32 %v1924, 0.0010283801
    %v1965 = vmul.f32 %v1925, 0.0010283801
    %v1966 = vmul.f32 %v1926, 0.0010283801
    %v1967 = vmul.f32 %v1927, 0.0010283801
    %v1968 = vmul.f32 %v1928, 0.0010283801
    %v1969 = vmul.f32 %v1929, 0.0010283801
    %v1970 = vmul.f32 %v1930, 0.0010283801
    %v1971 = vmul.f32 %v1931, 0.0010283801
    %v1972 = vmul.f32 %v1932, 0.0010283801
    %v1973 = vmul.f32 %v1933, 0.0010283801
    %v1974 = vmul.f32 %v1934, 0.0010283801
    %v1975 = vadd.f32 %v1855, %v1935
    %v1976 = vadd.f32 %v1856, %v1936
    %v1977 = vadd.f32 %v1857, %v1937
    %v1978 = vadd.f32 %v1858, %v1938
    %v1979 = vadd.f32 %v1859, %v1939
    %v1980 = vadd.f32 %v1860, %v1940
    %v1981 = vadd.f32 %v1861, %v1941
    %v1982 = vadd.f32 %v1862, %v1942
    %v1983 = vadd.f32 %v1863, %v1943
    %v1984 = vadd.f32 %v1864, %v1944
    %v1985 = vadd.f32 %v1865, %v1945
    %v1986 = vadd.f32 %v1866, %v1946
    %v1987 = vadd.f32 %v1867, %v1947
    %v1988 = vadd.f32 %v1868, %v1948
    %v1989 = vadd.f32 %v1869, %v1949
    %v1990 = vadd.f32 %v1870, %v1950
    %v1991 = vadd.f32 %v1871, %v1951
    %v1992 = vadd.f32 %v1872, %v1952
    %v1993 = vadd.f32 %v1873, %v1953
    %v1994 = vadd.f32 %v1874, %v1954
    %v1995 = vadd.f32 %v1875, %v1955
    %v1996 = vadd.f32 %v1876, %v1956
    %v1997 = vadd.f32 %v1877, %v1957
    %v1998 = vadd.f32 %v1878, %v1958
    %v1999 = vadd.f32 %v1879, %v1959
    %v2000 = vadd.f32 %v1880, %v1960
    %v2001 = vadd.f32 %v1881, %v1961
    %v2002 = vadd.f32 %v1882, %v1962
    %v2003 = vadd.f32 %v1883, %v1963
    %v2004 = vadd.f32 %v1884, %v1964
    %v2005 = vadd.f32 %v1885, %v1965
    %v2006 = vadd.f32 %v1886, %v1966
    %v2007 = vadd.f32 %v1887, %v1967
    %v2008 = vadd.f32 %v1888, %v1968
    %v2009 = vadd.f32 %v1889, %v1969
    %v2010 = vadd.f32 %v1890, %v1970
    %v2011 = vadd.f32 %v1891, %v1971
    %v2012 = vadd.f32 %v1892, %v1972
    %v2013 = vadd.f32 %v1893, %v1973
    %v2014 = vadd.f32 %v1894, %v1974
    %v2015 = vmul.f32 %v1975, %v1975
    %v2016 = vmul.f32 %v1976, %v1976
    %v2017 = vmul.f32 %v1977, %v1977
    %v2018 = vmul.f32 %v1978, %v1978
    %v2019 = vmul.f32 %v1979, %v1979
    %v2020 = vmul.f32 %v1980, %v1980
    %v2021 = vmul.f32 %v1981, %v1981
    %v2022 = vmul.f32 %v1982, %v1982
    %v2023 = vmul.f32 %v1983, %v1983
    %v2024 = vmul.f32 %v1984, %v1984
    %v2025 = vmul.f32 %v1985, %v1985
    %v2026 = vmul.f32 %v1986, %v1986
    %v2027 = vmul.f32 %v1987, %v1987
    %v2028 = vmul.f32 %v1988, %v1988
    %v2029 = vmul.f32 %v1989, %v1989
    %v2030 = vmul.f32 %v1990, %v1990
    %v2031 = vmul.f32 %v1975, %v1983
    %v2032 = vmul.f32 %v1976, %v1984
    %v2033 = vmul.f32 %v1977, %v1985
    %v2034 = vmul.f32 %v1978, %v1986
    %v2035 = vmul.f32 %v1979, %v1987
    %v2036 = vmul.f32 %v1980, %v1988
    %v2037 = vmul.f32 %v1981, %v1989
    %v2038 = vmul.f32 %v1982, %v1990
    %v2039 = vsub.f32 %v1991, %v2015
    %v2040 = vsub.f32 %v1992, %v2016
    %v2041 = vsub.f32 %v1993, %v2017
    %v2042 = vsub.f32 %v1994, %v2018
    %v2043 = vsub.f32 %v1995, %v2019
    %v2044 = vsub.f32 %v1996, %v2020
    %v2045 = vsub.f32 %v1997, %v2021
    %v2046 = vsub.f32 %v1998, %v2022
    %v2047 = vsub.f32 %v1999, %v2023
    %v2048 = vsub.f32 %v2000, %v2024
    %v2049 = vsub.f32 %v2001, %v2025
    %v2050 = vsub.f32 %v2002, %v2026
    %v2051 = vsub.f32 %v2003, %v2027
    %v2052 = vsub.f32 %v2004, %v2028
    %v2053 = vsub.f32 %v2005, %v2029
    %v2054 = vsub.f32 %v2006, %v2030
    %v2055 = vsub.f32 %v2007, %v2031
    %v2056 = vsub.f32 %v2008, %v2032
    %v2057 = vsub.f32 %v2009, %v2033
    %v2058 = vsub.f32 %v2010, %v2034
    %v2059 = vsub.f32 %v2011, %v2035
    %v2060 = vsub.f32 %v2012, %v2036
    %v2061 = vsub.f32 %v2013, %v2037
    %v2062 = vsub.f32 %v2014, %v2038
    %v2063 = vmul.f32 %v2055, 2.0
    %v2064 = vmul.f32 %v2056, 2.0
    %v2065 = vmul.f32 %v2057, 2.0
    %v2066 = vmul.f32 %v2058, 2.0
    %v2067 = vmul.f32 %v2059, 2.0
    %v2068 = vmul.f32 %v2060, 2.0
    %v2069 = vmul.f32 %v2061, 2.0
    %v2070 = vmul.f32 %v2062, 2.0
    %v2071 = vadd.f32 %v2063, 0.0009
    %v2072 = vadd.f32 %v2064, 0.0009
    %v2073 = vadd.f32 %v2065, 0.0009
    %v2074 = vadd.f32 %v2066, 0.0009
    %v2075 = vadd.f32 %v2067, 0.0009
    %v2076 = vadd.f32 %v2068, 0.0009
    %v2077 = vadd.f32 %v2069, 0.0009
    %v2078 = vadd.f32 %v2070, 0.0009
    %v2079 = vadd.f32 %v2039, %v2047
    %v2080 = vadd.f32 %v2040, %v2048
    %v2081 = vadd.f32 %v2041, %v2049
    %v2082 = vadd.f32 %v2042, %v2050
    %v2083 = vadd.f32 %v2043, %v2051
    %v2084 = vadd.f32 %v2044, %v2052
    %v2085 = vadd.f32 %v2045, %v2053
    %v2086 = vadd.f32 %v2046, %v2054
    %v2087 = vadd.f32 %v2079, 0.0009
    %v2088 = vadd.f32 %v2080, 0.0009
    %v2089 = vadd.f32 %v2081, 0.0009
    %v2090 = vadd.f32 %v2082, 0.0009
    %v2091 = vadd.f32 %v2083, 0.0009
    %v2092 = vadd.f32 %v2084, 0.0009
    %v2093 = vadd.f32 %v2085, 0.0009
    %v2094 = vadd.f32 %v2086, 0.0009
    %v2095 = vmul.f32 %v2031, 2.0
    %v2096 = vmul.f32 %v2032, 2.0
    %v2097 = vmul.f32 %v2033, 2.0
    %v2098 = vmul.f32 %v2034, 2.0
    %v2099 = vmul.f32 %v2035, 2.0
    %v2100 = vmul.f32 %v2036, 2.0
    %v2101 = vmul.f32 %v2037, 2.0
    %v2102 = vmul.f32 %v2038, 2.0
    %v2103 = vadd.f32 %v2095, 0.0001
    %v2104 = vadd.f32 %v2096, 0.0001
    %v2105 = vadd.f32 %v2097, 0.0001
    %v2106 = vadd.f32 %v2098, 0.0001
    %v2107 = vadd.f32 %v2099, 0.0001
    %v2108 = vadd.f32 %v2100, 0.0001
    %v2109 = vadd.f32 %v2101, 0.0001
    %v2110 = vadd.f32 %v2102, 0.0001
    %v2111 = vmul.f32 %v2103, %v2071
    %v2112 = vmul.f32 %v2104, %v2072
    %v2113 = vmul.f32 %v2105, %v2073
    %v2114 = vmul.f32 %v2106, %v2074
    %v2115 = vmul.f32 %v2107, %v2075
    %v2116 = vmul.f32 %v2108, %v2076
    %v2117 = vmul.f32 %v2109, %v2077
    %v2118 = vmul.f32 %v2110, %v2078
    %v2119 = vadd.f32 %v2015, %v2023
    %v2120 = vadd.f32 %v2016, %v2024
    %v2121 = vadd.f32 %v2017, %v2025
    %v2122 = vadd.f32 %v2018, %v2026
    %v2123 = vadd.f32 %v2019, %v2027
    %v2124 = vadd.f32 %v2020, %v2028
    %v2125 = vadd.f32 %v2021, %v2029
    %v2126 = vadd.f32 %v2022, %v2030
    %v2127 = vadd.f32 %v2119, 0.0001
    %v2128 = vadd.f32 %v2120, 0.0001
    %v2129 = vadd.f32 %v2121, 0.0001
    %v2130 = vadd.f32 %v2122, 0.0001
    %v2131 = vadd.f32 %v2123, 0.0001
    %v2132 = vadd.f32 %v2124, 0.0001
    %v2133 = vadd.f32 %v2125, 0.0001
    %v2134 = vadd.f32 %v2126, 0.0001
    %v2135 = vmul.f32 %v2127, %v2087
    %v2136 = vmul.f32 %v2128, %v2088
    %v2137 = vmul.f32 %v2129, %v2089
    %v2138 = vmul.f32 %v2130, %v2090
    %v2139 = vmul.f32 %v2131, %v2091
    %v2140 = vmul.f32 %v2132, %v2092
    %v2141 = vmul.f32 %v2133, %v2093
    %v2142 = vmul.f32 %v2134, %v2094
    %v2143 = vrcp.pop %v2135
    %v2144 = vrcp.pop %v2136
    %v2145 = vrcp.pop %v2137
    %v2146 = vrcp.pop %v2138
    %v2147 = vrcp.pop %v2139
    %v2148 = vrcp.pop %v2140
    %v2149 = vrcp.pop %v2141
    %v2150 = vrcp.pop %v2142
    %v2151 = vmul.f32 %v2135, %v2143
    %v2152 = vmul.f32 %v2136, %v2144
    %v2153 = vmul.f32 %v2137, %v2145
    %v2154 = vmul.f32 %v2138, %v2146
    %v2155 = vmul.f32 %v2139, %v2147
    %v2156 = vmul.f32 %v2140, %v2148
    %v2157 = vmul.f32 %v2141, %v2149
    %v2158 = vmul.f32 %v2142, %v2150
    %v2159 = vsub.f32 2.0, %v2151
    %v2160 = vsub.f32 2.0, %v2152
    %v2161 = vsub.f32 2.0, %v2153
    %v2162 = vsub.f32 2.0, %v2154
    %v2163 = vsub.f32 2.0, %v2155
    %v2164 = vsub.f32 2.0, %v2156
    %v2165 = vsub.f32 2.0, %v2157
    %v2166 = vsub.f32 2.0, %v2158
    %v2167 = vmul.f32 %v2143, %v2159
    %v2168 = vmul.f32 %v2144, %v2160
    %v2169 = vmul.f32 %v2145, %v2161
    %v2170 = vmul.f32 %v2146, %v2162
    %v2171 = vmul.f32 %v2147, %v2163
    %v2172 = vmul.f32 %v2148, %v2164
    %v2173 = vmul.f32 %v2149, %v2165
    %v2174 = vmul.f32 %v2150, %v2166
    %v2175 = vld [vmem:[#allocation3] sm:$0x3f]
    %v2176 = vld [vmem:[#allocation3 + $0x8] sm:$0x3f]
    %v2177 = vld [vmem:[#allocation3 + $0x10] sm:$0x3f]
    %v2178 = vld [vmem:[#allocation3 + $0x18] sm:$0x3f]
    %v2179 = vld [vmem:[#allocation3 + $0x20] sm:$0x3f]
    %v2180 = vld [vmem:[#allocation3 + $0x28] sm:$0x3f]
    %v2181 = vld [vmem:[#allocation3 + $0x30] sm:$0x3f]
    %v2182 = vld [vmem:[#allocation3 + $0x38] sm:$0x3f]
    %v2183 = vmul.f32 %v2111, %v2167
    %v2184 = vmul.f32 %v2112, %v2168
    %v2185 = vmul.f32 %v2113, %v2169
    %v2186 = vmul.f32 %v2114, %v2170
    %v2187 = vmul.f32 %v2115, %v2171
    %v2188 = vmul.f32 %v2116, %v2172
    %v2189 = vmul.f32 %v2117, %v2173
    %v2190 = vmul.f32 %v2118, %v2174
    %v2191 = vadd.f32 %v2175, %v2183
    %v2192 = vadd.f32 %v2176, %v2184
    %v2193 = vadd.f32 %v2177, %v2185
    %v2194 = vadd.f32 %v2178, %v2186
    %v2195 = vadd.f32 %v2179, %v2187
    %v2196 = vadd.f32 %v2180, %v2188
    %v2197 = vadd.f32 %v2181, %v2189
    %v2198 = vadd.f32 %v2182, %v2190
    %vm2199 = vcmask 46080
    %2200 = vst.msk [vmem:[#allocation3] sm:$0x3f] %vm2199, %v2191
    %2201 = vst.msk [vmem:[#allocation3 + $0x8] sm:$0x3f] %vm2199, %v2192
    %2202 = vst.msk [vmem:[#allocation3 + $0x10] sm:$0x3f] %vm2199, %v2193
    %2203 = vst.msk [vmem:[#allocation3 + $0x18] sm:$0x3f] %vm2199, %v2194
    %2204 = vst.msk [vmem:[#allocation3 + $0x20] sm:$0x3f] %vm2199, %v2195
    %2205 = vst.msk [vmem:[#allocation3 + $0x28] sm:$0x3f] %vm2199, %v2196
    %2206 = vst.msk [vmem:[#allocation3 + $0x30] sm:$0x3f] %vm2199, %v2197
    %2207 = vst.msk [vmem:[#allocation3 + $0x38] sm:$0x3f] %vm2199, %v2198
    // Predicated region
    $region26: #{tpu_custom_call.1} parent=1 // pred_check
      %p2208 = pneg %p61
    $region27: #{tpu_custom_call.1} parent=1 // pred_check_branch
      %2210 = sbr.rel (%p2208) target = $region29
    $region28: #{tpu_custom_call.1} parent=1 // pred_region
      %v2211 = vld [vmem:[#allocation3] sm:$0x3f]
      %v2212 = vld [vmem:[#allocation3 + $0x8] sm:$0x3f]
      %v2213 = vld [vmem:[#allocation3 + $0x10] sm:$0x3f]
      %v2214 = vld [vmem:[#allocation3 + $0x18] sm:$0x3f]
      %v2215 = vld [vmem:[#allocation3 + $0x20] sm:$0x3f]
      %v2216 = vld [vmem:[#allocation3 + $0x28] sm:$0x3f]
      %v2217 = vld [vmem:[#allocation3 + $0x30] sm:$0x3f]
      %v2218 = vld [vmem:[#allocation3 + $0x38] sm:$0x3f]
      %v2219 = vsel %vm2199, %v2211, 0.0
      %v2220 = vsel %vm2199, %v2212, 0.0
      %v2221 = vadd.f32 %v2219, %v2220
      %v2222 = vsel %vm2199, %v2213, 0.0
      %v2223 = vadd.f32 %v2221, %v2222
      %v2224 = vsel %vm2199, %v2214, 0.0
      %v2225 = vadd.f32 %v2223, %v2224
      %v2226 = vsel %vm2199, %v2215, 0.0
      %v2227 = vadd.f32 %v2225, %v2226
      %v2228 = vsel %vm2199, %v2216, 0.0
      %v2229 = vadd.f32 %v2227, %v2228
      %v2230 = vsel %vm2199, %v2217, 0.0
      %v2231 = vadd.f32 %v2229, %v2230
      %v2232 = vsel %vm2199, %v2218, 0.0
      %v2233 = vadd.f32 %v2231, %v2232
      %2234 = vadd.xlane.f32.xlu0 %v2233
      %v2235 = vpop.xlane.xlu0 %2234
      %v2236 = vrot.slane %v2235, 4
      %v2237 = vadd.f32 %v2235, %v2236
      %v2238 = vrot.slane %v2237, 2
      %v2239 = vadd.f32 %v2237, %v2238
      %v2240 = vrot.slane %v2239, 1
      %v2241 = vadd.f32 %v2239, %v2240
      %s2242 = vtos %v2241
      %s2243 = scalar_lea.smem [#allocation9], 0
      %2244 = sst [smem:[%s2243]] %s2242
    $region29: #{tpu_custom_call.1} parent=1 // pred_fallthru
      _
    // Predicated region
    $region30: #{tpu_custom_call.1} parent=1 // pred_check
      _
    $region31: #{tpu_custom_call.1} parent=1 // pred_check_branch
      %2246 = sbr.rel (0) target = $region33
    $region32: #{tpu_custom_call.1} parent=1 // pred_region
      %2248 = vsyncadd [#allocation6], 0
      %s2250 = sshll.u32 %s3, 4
      %s2251 = int_to_ptr.hbm [resolvable:$true] %s2250
      %2253 = dma.smem_to_hbm [#allocation9], 16, %s2251, [#allocation6]
    $region33: #{tpu_custom_call.1} parent=1 // pred_fallthru
      _
    // Predicated region
    $region34: #{tpu_custom_call.1} parent=1 // pred_check
      _
    $region35: #{tpu_custom_call.1} parent=1 // pred_check_branch
      %2255 = sbr.rel (0) target = $region37
    $region36: #{tpu_custom_call.1} parent=1 // pred_region
      %2257 = dma.done [#allocation6], 16
    $region37: #{tpu_custom_call.1} parent=1 // pred_fallthru
      _
    %2258 = sfence
    %2259 = vsyncpa [#allocation5], 1
    %2260 = vsyncpa [#allocation8], 1
    %2261 = vsyncpa [#allocation6], 1

</llo_original>
